<compile_context>
chip_gen: v7x
topology: tpu7x:2x2x1
jax: 0.10.0
libtpu: 0.0.40
codegen_flags: <defaults>
</compile_context>

<pallas_src>
import jax
import jax.numpy as jnp
from jax.experimental import pallas as pl
from jax.experimental.pallas import tpu as pltpu

# ----------------------------- small synthetic config -----------------------
B = 2            # batch
S = 8            # sequence length
D = 32           # hidden size
H = 2            # attention heads
HD = D // H      # head dim = 16
I = 64           # MLP intermediate size
VOCAB = 128
NUM_HIDDEN_LAYERS = 4                       # must be even (asserted in module)
L = NUM_HIDDEN_LAYERS // 2                  # layers in the first half
BS = B * S                                  # fused (batch * seq) rows
RMS_EPS = 1e-6
ROPE_THETA = 10000.0
SCALE = 1.0 / (HD ** 0.5)
NEG_INF = -1e30


def _half_swap_heads(x, n_segs):
    """Swap the two HD/2-wide halves of each HD-wide head segment of x
    (static lane slices only — the rotate_half sign lives in the sin table)."""
    segs = []
    for s in range(n_segs):
        lo = x[:, s * HD: s * HD + HD // 2]
        hi = x[:, s * HD + HD // 2: (s + 1) * HD]
        segs.append(hi)
        segs.append(lo)
    return jnp.concatenate(segs, axis=-1)


def llama_first_half_kernel(x_ref, mask_ref, rope_ref,
                            ln1_ref, wqkv_ref, wo_ref, ln2_ref, wgu_ref,
                            wd_ref, o_ref):
    x = x_ref[...]                         # (BS, D)  f32 hidden states
    mask = mask_ref[...]                   # (BS, BS) additive block-diag causal bias
    rope = rope_ref[...]                   # (BS, 4D) = [cos_q|cos_k | ssin_q|ssin_k]
    cos = rope[:, :2 * D]                  # (BS, 2D) — q columns pre-scaled by 1/sqrt(HD)
    ssin = rope[:, 2 * D:]                 # (BS, 2D) — signed sin (rotate_half sign folded in)

    # Fully unrolled in-kernel loop over the first-half decoder layers; the
    # hidden state `x` is carried as a value (no VMEM scratch round-trip).
    for l in range(L):
        # ---------------- input RMSNorm + fused QKV projection -------------
        var = jnp.mean(x * x, axis=-1, keepdims=True)
        xn = (x * jax.lax.rsqrt(var + RMS_EPS) * ln1_ref[l]).astype(jnp.bfloat16)
        qkv = jnp.dot(xn, wqkv_ref[l], preferred_element_type=jnp.float32)  # (BS, 3D)
        qk = qkv[:, :2 * D]
        v = qkv[:, 2 * D:]

        # ---------------- RoPE on the q|k slab in one pass ------------------
        qk_rot = qk * cos + _half_swap_heads(qk, 2 * H) * ssin
        q = qk_rot[:, :D]                  # already scaled by 1/sqrt(HD)
        k = qk_rot[:, D:]

        # ---------------- per-head causal attention -------------------------
        heads = []
        for h in range(H):
            qh = q[:, h * HD:(h + 1) * HD].astype(jnp.bfloat16)
            kh = k[:, h * HD:(h + 1) * HD].astype(jnp.bfloat16)
            vh = v[:, h * HD:(h + 1) * HD].astype(jnp.bfloat16)
            s = jax.lax.dot_general(qh, kh, (((1,), (1,)), ((), ())),
                                    preferred_element_type=jnp.float32)
            s = s + mask
            m = jnp.max(s, axis=-1, keepdims=True)
            p = jnp.exp(s - m)
            p = p * pl.reciprocal(jnp.sum(p, axis=-1, keepdims=True), approx=True)
            heads.append(jnp.dot(p.astype(jnp.bfloat16), vh,
                                 preferred_element_type=jnp.float32))  # (BS, HD)

        # Lane-concat of head outputs -> ONE o-projection matmul.
        attn_cat = jnp.concatenate(heads, axis=-1).astype(jnp.bfloat16)   # (BS, D)
        attn = jnp.dot(attn_cat, wo_ref[l], preferred_element_type=jnp.float32)
        h1 = x + attn                                                     # residual

        # ---------------- post-attention RMSNorm + fused SwiGLU MLP ---------
        var2 = jnp.mean(h1 * h1, axis=-1, keepdims=True)
        h1n = (h1 * jax.lax.rsqrt(var2 + RMS_EPS) * ln2_ref[l]).astype(jnp.bfloat16)
        gu = jnp.dot(h1n, wgu_ref[l], preferred_element_type=jnp.float32)  # (BS, 2I)
        g = gu[:, :I]
        u = gu[:, I:]
        act = (g * jax.nn.sigmoid(g) * u).astype(jnp.bfloat16)            # SiLU(g)*u
        mlp = jnp.dot(act, wd_ref[l], preferred_element_type=jnp.float32)

        x = h1 + mlp

    o_ref[...] = x


def run_llama_layers(x, mask, rope, p):
    vmem = pl.BlockSpec(memory_space=pltpu.MemorySpace.VMEM)

    flops_layer = (2 * BS * D * 3 * D + 4 * H * BS * BS * HD
                   + 2 * BS * D * D + 2 * BS * D * 2 * I + 2 * BS * I * D)
    bytes_layer = 2 * (D * 3 * D + D * D + D * 2 * I + I * D) + 4 * 2 * D
    cost = pl.CostEstimate(
        flops=L * flops_layer,
        transcendentals=L * (H * BS * BS + BS * I + 2 * BS),
        bytes_accessed=L * bytes_layer + 4 * (2 * BS * D + BS * BS + 4 * BS * D),
    )

    return pl.pallas_call(
        llama_first_half_kernel,
        out_shape=jax.ShapeDtypeStruct((BS, D), jnp.float32),
        in_specs=[vmem] * 9,          # whole arrays resident in VMEM, single invocation
        out_specs=vmem,
        cost_estimate=cost,
    )(x, mask, rope,
      p["ln1"], p["wqkv"], p["wo"], p["ln2"], p["wgu"], p["wd"])


def rope_cos_sin(seq_len, head_dim, theta):
    inv_freq = 1.0 / (theta ** (jnp.arange(0, head_dim, 2, dtype=jnp.float32)
                                / head_dim))
    pos = jnp.arange(seq_len, dtype=jnp.float32)     # cache_position = arange(S)
    freqs = pos[:, None] * inv_freq[None, :]         # (S, HD/2)
    emb = jnp.concatenate([freqs, freqs], axis=-1)   # (S, HD)
    return jnp.cos(emb), jnp.sin(emb)


def init_params(key):
    def normal(k, shape, scale=0.02):
        return scale * jax.random.normal(k, shape, dtype=jnp.float32)

    keys = jax.random.split(key, 5)
    return {
        "embed": normal(keys[0], (VOCAB, D)),
        "ln1": jnp.ones((L, 1, D), jnp.float32),
        "ln2": jnp.ones((L, 1, D), jnp.float32),
        # fused + stacked weights, stored bf16 in HBM (f32 accumulation in-kernel)
        "wqkv": normal(keys[1], (L, D, 3 * D)).astype(jnp.bfloat16),
        "wo": normal(keys[2], (L, D, D)).astype(jnp.bfloat16),
        "wgu": normal(keys[3], (L, D, 2 * I)).astype(jnp.bfloat16),
        "wd": normal(keys[4], (L, I, D)).astype(jnp.bfloat16),
    }


@jax.jit
def llama_first_half(input_ids, params):
    # inputs_embeds = embed_tokens(input_ids)   (gather glue stays in plain JAX)
    hidden = params["embed"][input_ids].astype(jnp.float32)       # (B, S, D)
    x = hidden.reshape(BS, D)                                     # fused (batch*seq) rows

    # position_embeddings = rotary_emb(hidden, position_ids=arange(S)).
    # Signed-sin table folds the rotate_half sign; the 1/sqrt(HD) score scale
    # is folded into the q columns.  Packed lane-dense as (BS, 4D=128):
    # [ cos_q | cos_k | ssin_q | ssin_k ], each tiled over heads and batch.
    cos, sin = rope_cos_sin(S, HD, ROPE_THETA)                    # (S, HD)
    ssin = jnp.concatenate([-sin[:, :HD // 2], sin[:, HD // 2:]], axis=-1)
    cos_qk = jnp.concatenate([jnp.tile(cos * SCALE, (B, H)),
                              jnp.tile(cos, (B, H))], axis=-1)    # (BS, 2D)
    ssin_qk = jnp.concatenate([jnp.tile(ssin * SCALE, (B, H)),
                               jnp.tile(ssin, (B, H))], axis=-1)  # (BS, 2D)
    rope = jnp.concatenate([cos_qk, ssin_qk], axis=-1)            # (BS, 4D)

    # block-diagonal causal additive bias over the fused (batch*seq) rows
    idx = jnp.arange(BS)
    same_batch = (idx[:, None] // S) == (idx[None, :] // S)
    causal = idx[:, None] >= idx[None, :]
    bias = jnp.where(same_batch & causal, 0.0, NEG_INF).astype(jnp.float32)

    out = run_llama_layers(x, bias, rope, params)
    return out.reshape(B, S, D)
    # TODO(synk): DynamicCache / past_key_values updates (use_cache path) and
    # padded attention_mask handling are not modeled; this is the stateless
    # prefill forward with a pure causal mask.


if __name__ == "__main__":
    key = jax.random.PRNGKey(0)
    k_params, k_ids = jax.random.split(key)
    params = init_params(k_params)
    input_ids = jax.random.randint(k_ids, (B, S), 0, VOCAB, dtype=jnp.int32)

    out = llama_first_half(input_ids, params)
    jax.block_until_ready(out)
    assert out.shape == (B, S, D) and out.dtype == jnp.float32
    assert bool(jnp.all(jnp.isfinite(out)))
    print("KERNEL_OK")
</pallas_src>

<mosaic_0001>
module attributes {stable_mosaic.version = 11 : i64} {
  func.func @llama_first_half_kernel(%arg0: memref<16x32xf32, #tpu.memory_space<vmem>>, %arg1: memref<16x16xf32, #tpu.memory_space<vmem>>, %arg2: memref<16x128xf32, #tpu.memory_space<vmem>>, %arg3: memref<2x1x32xf32, #tpu.memory_space<vmem>>, %arg4: memref<2x32x96xbf16, #tpu.memory_space<vmem>>, %arg5: memref<2x32x32xbf16, #tpu.memory_space<vmem>>, %arg6: memref<2x1x32xf32, #tpu.memory_space<vmem>>, %arg7: memref<2x32x128xbf16, #tpu.memory_space<vmem>>, %arg8: memref<2x64x32xbf16, #tpu.memory_space<vmem>>, %arg9: memref<16x32xf32, #tpu.memory_space<vmem>>) attributes {dimension_semantics = [], scalar_prefetch = 0 : i64, scratch_operands = 0 : i64, tpu.core_type = #tpu.core_type<tc>} {
    %c0 = arith.constant 0 : index
    %c0_0 = arith.constant 0 : index
    %0 = vector.load %arg0[%c0, %c0_0] : memref<16x32xf32, #tpu.memory_space<vmem>>, vector<16x32xf32>
    %c0_1 = arith.constant 0 : index
    %c0_2 = arith.constant 0 : index
    %1 = vector.load %arg1[%c0_1, %c0_2] : memref<16x16xf32, #tpu.memory_space<vmem>>, vector<16x16xf32>
    %c0_3 = arith.constant 0 : index
    %c0_4 = arith.constant 0 : index
    %2 = vector.load %arg2[%c0_3, %c0_4] : memref<16x128xf32, #tpu.memory_space<vmem>>, vector<16x128xf32>
    %3 = vector.extract_strided_slice %2 {offsets = [0, 0], sizes = [16, 64], strides = [1, 1]} : vector<16x128xf32> to vector<16x64xf32>
    %4 = vector.extract_strided_slice %2 {offsets = [0, 64], sizes = [16, 64], strides = [1, 1]} : vector<16x128xf32> to vector<16x64xf32>
    %5 = arith.mulf %0, %0 : vector<16x32xf32>
    %cst = arith.constant dense<0.000000e+00> : vector<16xf32>
    %6 = vector.multi_reduction <add>, %5, %cst [1] : vector<16x32xf32> to vector<16xf32>
    %7 = vector.shape_cast %6 : vector<16xf32> to vector<16x1xf32>
    %cst_5 = arith.constant 3.200000e+01 : f32
    %8 = vector.broadcast %cst_5 : f32 to vector<16x1xf32>
    %9 = arith.divf %7, %8 : vector<16x1xf32>
    %cst_6 = arith.constant 9.99999997E-7 : f32
    %10 = vector.broadcast %cst_6 : f32 to vector<16x1xf32>
    %11 = arith.addf %9, %10 : vector<16x1xf32>
    %12 = math.rsqrt %11 : vector<16x1xf32>
    %13 = vector.broadcast %12 : vector<16x1xf32> to vector<16x32xf32>
    %14 = arith.mulf %0, %13 : vector<16x32xf32>
    %c0_7 = arith.constant 0 : index
    %c0_8 = arith.constant 0 : index
    %c0_9 = arith.constant 0 : index
    %15 = vector.load %arg3[%c0_7, %c0_8, %c0_9] : memref<2x1x32xf32, #tpu.memory_space<vmem>>, vector<1x1x32xf32>
    %16 = vector.shape_cast %15 : vector<1x1x32xf32> to vector<1x32xf32>
    %17 = vector.broadcast %16 : vector<1x32xf32> to vector<16x32xf32>
    %18 = arith.mulf %14, %17 : vector<16x32xf32>
    %19 = arith.truncf %18 : vector<16x32xf32> to vector<16x32xbf16>
    %c0_10 = arith.constant 0 : index
    %c0_11 = arith.constant 0 : index
    %c0_12 = arith.constant 0 : index
    %20 = vector.load %arg4[%c0_10, %c0_11, %c0_12] : memref<2x32x96xbf16, #tpu.memory_space<vmem>>, vector<1x32x96xbf16>
    %21 = vector.shape_cast %20 : vector<1x32x96xbf16> to vector<32x96xbf16>
    %cst_13 = arith.constant dense<0.000000e+00> : vector<16x96xf32>
    %22 = tpu.matmul %19, %21, %cst_13 {dimension_numbers = #tpu.dot_dimension_numbers<[1], [0], [0], [1], [0, 0, 1, 1], [], []>} : vector<16x32xbf16>, vector<32x96xbf16>, vector<16x96xf32> -> vector<16x96xf32>
    %23 = vector.extract_strided_slice %22 {offsets = [0, 0], sizes = [16, 64], strides = [1, 1]} : vector<16x96xf32> to vector<16x64xf32>
    %24 = vector.extract_strided_slice %22 {offsets = [0, 64], sizes = [16, 32], strides = [1, 1]} : vector<16x96xf32> to vector<16x32xf32>
    %25 = arith.mulf %23, %3 : vector<16x64xf32>
    %26 = vector.extract_strided_slice %23 {offsets = [0, 0], sizes = [16, 8], strides = [1, 1]} : vector<16x64xf32> to vector<16x8xf32>
    %27 = vector.extract_strided_slice %23 {offsets = [0, 8], sizes = [16, 8], strides = [1, 1]} : vector<16x64xf32> to vector<16x8xf32>
    %28 = vector.extract_strided_slice %23 {offsets = [0, 16], sizes = [16, 8], strides = [1, 1]} : vector<16x64xf32> to vector<16x8xf32>
    %29 = vector.extract_strided_slice %23 {offsets = [0, 24], sizes = [16, 8], strides = [1, 1]} : vector<16x64xf32> to vector<16x8xf32>
    %30 = vector.extract_strided_slice %23 {offsets = [0, 32], sizes = [16, 8], strides = [1, 1]} : vector<16x64xf32> to vector<16x8xf32>
    %31 = vector.extract_strided_slice %23 {offsets = [0, 40], sizes = [16, 8], strides = [1, 1]} : vector<16x64xf32> to vector<16x8xf32>
    %32 = vector.extract_strided_slice %23 {offsets = [0, 48], sizes = [16, 8], strides = [1, 1]} : vector<16x64xf32> to vector<16x8xf32>
    %33 = vector.extract_strided_slice %23 {offsets = [0, 56], sizes = [16, 8], strides = [1, 1]} : vector<16x64xf32> to vector<16x8xf32>
    %34 = tpu.concatenate %27, %26, %29, %28, %31, %30, %33, %32 in 1 : vector<16x8xf32>, vector<16x8xf32>, vector<16x8xf32>, vector<16x8xf32>, vector<16x8xf32>, vector<16x8xf32>, vector<16x8xf32>, vector<16x8xf32> -> vector<16x64xf32>
    %35 = arith.mulf %34, %4 : vector<16x64xf32>
    %36 = arith.addf %25, %35 : vector<16x64xf32>
    %37 = vector.extract_strided_slice %36 {offsets = [0, 0], sizes = [16, 32], strides = [1, 1]} : vector<16x64xf32> to vector<16x32xf32>
    %38 = vector.extract_strided_slice %36 {offsets = [0, 32], sizes = [16, 32], strides = [1, 1]} : vector<16x64xf32> to vector<16x32xf32>
    %39 = vector.extract_strided_slice %37 {offsets = [0, 0], sizes = [16, 16], strides = [1, 1]} : vector<16x32xf32> to vector<16x16xf32>
    %40 = arith.truncf %39 : vector<16x16xf32> to vector<16x16xbf16>
    %41 = vector.extract_strided_slice %38 {offsets = [0, 0], sizes = [16, 16], strides = [1, 1]} : vector<16x32xf32> to vector<16x16xf32>
    %42 = arith.truncf %41 : vector<16x16xf32> to vector<16x16xbf16>
    %43 = vector.extract_strided_slice %24 {offsets = [0, 0], sizes = [16, 16], strides = [1, 1]} : vector<16x32xf32> to vector<16x16xf32>
    %44 = arith.truncf %43 : vector<16x16xf32> to vector<16x16xbf16>
    %cst_14 = arith.constant dense<0.000000e+00> : vector<16x16xf32>
    %45 = tpu.matmul %40, %42, %cst_14 {dimension_numbers = #tpu.dot_dimension_numbers<[1], [1], [0], [0], [0, 0, 1, 0], [], []>} : vector<16x16xbf16>, vector<16x16xbf16>, vector<16x16xf32> -> vector<16x16xf32>
    %46 = arith.addf %45, %1 : vector<16x16xf32>
    %cst_15 = arith.constant dense<0xFF800000> : vector<16xf32>
    %47 = vector.multi_reduction <maximumf>, %46, %cst_15 [1] : vector<16x16xf32> to vector<16xf32>
    %48 = vector.shape_cast %47 : vector<16xf32> to vector<16x1xf32>
    %49 = vector.broadcast %48 : vector<16x1xf32> to vector<16x16xf32>
    %50 = arith.subf %46, %49 : vector<16x16xf32>
    %51 = math.exp %50 : vector<16x16xf32>
    %cst_16 = arith.constant dense<0.000000e+00> : vector<16xf32>
    %52 = vector.multi_reduction <add>, %51, %cst_16 [1] : vector<16x16xf32> to vector<16xf32>
    %53 = vector.shape_cast %52 : vector<16xf32> to vector<16x1xf32>
    %54 = tpu.reciprocal %53 {approx = true} : vector<16x1xf32> -> vector<16x1xf32>
    %55 = vector.broadcast %54 : vector<16x1xf32> to vector<16x16xf32>
    %56 = arith.mulf %51, %55 : vector<16x16xf32>
    %57 = arith.truncf %56 : vector<16x16xf32> to vector<16x16xbf16>
    %cst_17 = arith.constant dense<0.000000e+00> : vector<16x16xf32>
    %58 = tpu.matmul %57, %44, %cst_17 {dimension_numbers = #tpu.dot_dimension_numbers<[1], [0], [0], [1], [0, 0, 1, 1], [], []>} : vector<16x16xbf16>, vector<16x16xbf16>, vector<16x16xf32> -> vector<16x16xf32>
    %59 = vector.extract_strided_slice %37 {offsets = [0, 16], sizes = [16, 16], strides = [1, 1]} : vector<16x32xf32> to vector<16x16xf32>
    %60 = arith.truncf %59 : vector<16x16xf32> to vector<16x16xbf16>
    %61 = vector.extract_strided_slice %38 {offsets = [0, 16], sizes = [16, 16], strides = [1, 1]} : vector<16x32xf32> to vector<16x16xf32>
    %62 = arith.truncf %61 : vector<16x16xf32> to vector<16x16xbf16>
    %63 = vector.extract_strided_slice %24 {offsets = [0, 16], sizes = [16, 16], strides = [1, 1]} : vector<16x32xf32> to vector<16x16xf32>
    %64 = arith.truncf %63 : vector<16x16xf32> to vector<16x16xbf16>
    %cst_18 = arith.constant dense<0.000000e+00> : vector<16x16xf32>
    %65 = tpu.matmul %60, %62, %cst_18 {dimension_numbers = #tpu.dot_dimension_numbers<[1], [1], [0], [0], [0, 0, 1, 0], [], []>} : vector<16x16xbf16>, vector<16x16xbf16>, vector<16x16xf32> -> vector<16x16xf32>
    %66 = arith.addf %65, %1 : vector<16x16xf32>
    %cst_19 = arith.constant dense<0xFF800000> : vector<16xf32>
    %67 = vector.multi_reduction <maximumf>, %66, %cst_19 [1] : vector<16x16xf32> to vector<16xf32>
    %68 = vector.shape_cast %67 : vector<16xf32> to vector<16x1xf32>
    %69 = vector.broadcast %68 : vector<16x1xf32> to vector<16x16xf32>
    %70 = arith.subf %66, %69 : vector<16x16xf32>
    %71 = math.exp %70 : vector<16x16xf32>
    %cst_20 = arith.constant dense<0.000000e+00> : vector<16xf32>
    %72 = vector.multi_reduction <add>, %71, %cst_20 [1] : vector<16x16xf32> to vector<16xf32>
    %73 = vector.shape_cast %72 : vector<16xf32> to vector<16x1xf32>
    %74 = tpu.reciprocal %73 {approx = true} : vector<16x1xf32> -> vector<16x1xf32>
    %75 = vector.broadcast %74 : vector<16x1xf32> to vector<16x16xf32>
    %76 = arith.mulf %71, %75 : vector<16x16xf32>
    %77 = arith.truncf %76 : vector<16x16xf32> to vector<16x16xbf16>
    %cst_21 = arith.constant dense<0.000000e+00> : vector<16x16xf32>
    %78 = tpu.matmul %77, %64, %cst_21 {dimension_numbers = #tpu.dot_dimension_numbers<[1], [0], [0], [1], [0, 0, 1, 1], [], []>} : vector<16x16xbf16>, vector<16x16xbf16>, vector<16x16xf32> -> vector<16x16xf32>
    %79 = tpu.concatenate %58, %78 in 1 : vector<16x16xf32>, vector<16x16xf32> -> vector<16x32xf32>
    %80 = arith.truncf %79 : vector<16x32xf32> to vector<16x32xbf16>
    %c0_22 = arith.constant 0 : index
    %c0_23 = arith.constant 0 : index
    %c0_24 = arith.constant 0 : index
    %81 = vector.load %arg5[%c0_22, %c0_23, %c0_24] : memref<2x32x32xbf16, #tpu.memory_space<vmem>>, vector<1x32x32xbf16>
    %82 = vector.shape_cast %81 : vector<1x32x32xbf16> to vector<32x32xbf16>
    %cst_25 = arith.constant dense<0.000000e+00> : vector<16x32xf32>
    %83 = tpu.matmul %80, %82, %cst_25 {dimension_numbers = #tpu.dot_dimension_numbers<[1], [0], [0], [1], [0, 0, 1, 1], [], []>} : vector<16x32xbf16>, vector<32x32xbf16>, vector<16x32xf32> -> vector<16x32xf32>
    %84 = arith.addf %0, %83 : vector<16x32xf32>
    %85 = arith.mulf %84, %84 : vector<16x32xf32>
    %cst_26 = arith.constant dense<0.000000e+00> : vector<16xf32>
    %86 = vector.multi_reduction <add>, %85, %cst_26 [1] : vector<16x32xf32> to vector<16xf32>
    %87 = vector.shape_cast %86 : vector<16xf32> to vector<16x1xf32>
    %cst_27 = arith.constant 3.200000e+01 : f32
    %88 = vector.broadcast %cst_27 : f32 to vector<16x1xf32>
    %89 = arith.divf %87, %88 : vector<16x1xf32>
    %cst_28 = arith.constant 9.99999997E-7 : f32
    %90 = vector.broadcast %cst_28 : f32 to vector<16x1xf32>
    %91 = arith.addf %89, %90 : vector<16x1xf32>
    %92 = math.rsqrt %91 : vector<16x1xf32>
    %93 = vector.broadcast %92 : vector<16x1xf32> to vector<16x32xf32>
    %94 = arith.mulf %84, %93 : vector<16x32xf32>
    %c0_29 = arith.constant 0 : index
    %c0_30 = arith.constant 0 : index
    %c0_31 = arith.constant 0 : index
    %95 = vector.load %arg6[%c0_29, %c0_30, %c0_31] : memref<2x1x32xf32, #tpu.memory_space<vmem>>, vector<1x1x32xf32>
    %96 = vector.shape_cast %95 : vector<1x1x32xf32> to vector<1x32xf32>
    %97 = vector.broadcast %96 : vector<1x32xf32> to vector<16x32xf32>
    %98 = arith.mulf %94, %97 : vector<16x32xf32>
    %99 = arith.truncf %98 : vector<16x32xf32> to vector<16x32xbf16>
    %c0_32 = arith.constant 0 : index
    %c0_33 = arith.constant 0 : index
    %c0_34 = arith.constant 0 : index
    %100 = vector.load %arg7[%c0_32, %c0_33, %c0_34] : memref<2x32x128xbf16, #tpu.memory_space<vmem>>, vector<1x32x128xbf16>
    %101 = vector.shape_cast %100 : vector<1x32x128xbf16> to vector<32x128xbf16>
    %cst_35 = arith.constant dense<0.000000e+00> : vector<16x128xf32>
    %102 = tpu.matmul %99, %101, %cst_35 {dimension_numbers = #tpu.dot_dimension_numbers<[1], [0], [0], [1], [0, 0, 1, 1], [], []>} : vector<16x32xbf16>, vector<32x128xbf16>, vector<16x128xf32> -> vector<16x128xf32>
    %103 = vector.extract_strided_slice %102 {offsets = [0, 0], sizes = [16, 64], strides = [1, 1]} : vector<16x128xf32> to vector<16x64xf32>
    %104 = vector.extract_strided_slice %102 {offsets = [0, 64], sizes = [16, 64], strides = [1, 1]} : vector<16x128xf32> to vector<16x64xf32>
    %105 = arith.negf %103 : vector<16x64xf32>
    %106 = math.exp %105 : vector<16x64xf32>
    %cst_36 = arith.constant 1.000000e+00 : f32
    %107 = vector.broadcast %cst_36 : f32 to vector<16x64xf32>
    %108 = arith.addf %107, %106 : vector<16x64xf32>
    %109 = arith.divf %107, %108 : vector<16x64xf32>
    %110 = arith.mulf %103, %109 : vector<16x64xf32>
    %111 = arith.mulf %110, %104 : vector<16x64xf32>
    %112 = arith.truncf %111 : vector<16x64xf32> to vector<16x64xbf16>
    %c0_37 = arith.constant 0 : index
    %c0_38 = arith.constant 0 : index
    %c0_39 = arith.constant 0 : index
    %113 = vector.load %arg8[%c0_37, %c0_38, %c0_39] : memref<2x64x32xbf16, #tpu.memory_space<vmem>>, vector<1x64x32xbf16>
    %114 = vector.shape_cast %113 : vector<1x64x32xbf16> to vector<64x32xbf16>
    %cst_40 = arith.constant dense<0.000000e+00> : vector<16x32xf32>
    %115 = tpu.matmul %112, %114, %cst_40 {dimension_numbers = #tpu.dot_dimension_numbers<[1], [0], [0], [1], [0, 0, 1, 1], [], []>} : vector<16x64xbf16>, vector<64x32xbf16>, vector<16x32xf32> -> vector<16x32xf32>
    %116 = arith.addf %84, %115 : vector<16x32xf32>
    %117 = arith.mulf %116, %116 : vector<16x32xf32>
    %cst_41 = arith.constant dense<0.000000e+00> : vector<16xf32>
    %118 = vector.multi_reduction <add>, %117, %cst_41 [1] : vector<16x32xf32> to vector<16xf32>
    %119 = vector.shape_cast %118 : vector<16xf32> to vector<16x1xf32>
    %cst_42 = arith.constant 3.200000e+01 : f32
    %120 = vector.broadcast %cst_42 : f32 to vector<16x1xf32>
    %121 = arith.divf %119, %120 : vector<16x1xf32>
    %cst_43 = arith.constant 9.99999997E-7 : f32
    %122 = vector.broadcast %cst_43 : f32 to vector<16x1xf32>
    %123 = arith.addf %121, %122 : vector<16x1xf32>
    %124 = math.rsqrt %123 : vector<16x1xf32>
    %125 = vector.broadcast %124 : vector<16x1xf32> to vector<16x32xf32>
    %126 = arith.mulf %116, %125 : vector<16x32xf32>
    %c1 = arith.constant 1 : index
    %c0_44 = arith.constant 0 : index
    %c0_45 = arith.constant 0 : index
    %127 = vector.load %arg3[%c1, %c0_44, %c0_45] : memref<2x1x32xf32, #tpu.memory_space<vmem>>, vector<1x1x32xf32>
    %128 = vector.shape_cast %127 : vector<1x1x32xf32> to vector<1x32xf32>
    %129 = vector.broadcast %128 : vector<1x32xf32> to vector<16x32xf32>
    %130 = arith.mulf %126, %129 : vector<16x32xf32>
    %131 = arith.truncf %130 : vector<16x32xf32> to vector<16x32xbf16>
    %c1_46 = arith.constant 1 : index
    %c0_47 = arith.constant 0 : index
    %c0_48 = arith.constant 0 : index
    %132 = vector.load %arg4[%c1_46, %c0_47, %c0_48] : memref<2x32x96xbf16, #tpu.memory_space<vmem>>, vector<1x32x96xbf16>
    %133 = vector.shape_cast %132 : vector<1x32x96xbf16> to vector<32x96xbf16>
    %cst_49 = arith.constant dense<0.000000e+00> : vector<16x96xf32>
    %134 = tpu.matmul %131, %133, %cst_49 {dimension_numbers = #tpu.dot_dimension_numbers<[1], [0], [0], [1], [0, 0, 1, 1], [], []>} : vector<16x32xbf16>, vector<32x96xbf16>, vector<16x96xf32> -> vector<16x96xf32>
    %135 = vector.extract_strided_slice %134 {offsets = [0, 0], sizes = [16, 64], strides = [1, 1]} : vector<16x96xf32> to vector<16x64xf32>
    %136 = vector.extract_strided_slice %134 {offsets = [0, 64], sizes = [16, 32], strides = [1, 1]} : vector<16x96xf32> to vector<16x32xf32>
    %137 = arith.mulf %135, %3 : vector<16x64xf32>
    %138 = vector.extract_strided_slice %135 {offsets = [0, 0], sizes = [16, 8], strides = [1, 1]} : vector<16x64xf32> to vector<16x8xf32>
    %139 = vector.extract_strided_slice %135 {offsets = [0, 8], sizes = [16, 8], strides = [1, 1]} : vector<16x64xf32> to vector<16x8xf32>
    %140 = vector.extract_strided_slice %135 {offsets = [0, 16], sizes = [16, 8], strides = [1, 1]} : vector<16x64xf32> to vector<16x8xf32>
    %141 = vector.extract_strided_slice %135 {offsets = [0, 24], sizes = [16, 8], strides = [1, 1]} : vector<16x64xf32> to vector<16x8xf32>
    %142 = vector.extract_strided_slice %135 {offsets = [0, 32], sizes = [16, 8], strides = [1, 1]} : vector<16x64xf32> to vector<16x8xf32>
    %143 = vector.extract_strided_slice %135 {offsets = [0, 40], sizes = [16, 8], strides = [1, 1]} : vector<16x64xf32> to vector<16x8xf32>
    %144 = vector.extract_strided_slice %135 {offsets = [0, 48], sizes = [16, 8], strides = [1, 1]} : vector<16x64xf32> to vector<16x8xf32>
    %145 = vector.extract_strided_slice %135 {offsets = [0, 56], sizes = [16, 8], strides = [1, 1]} : vector<16x64xf32> to vector<16x8xf32>
    %146 = tpu.concatenate %139, %138, %141, %140, %143, %142, %145, %144 in 1 : vector<16x8xf32>, vector<16x8xf32>, vector<16x8xf32>, vector<16x8xf32>, vector<16x8xf32>, vector<16x8xf32>, vector<16x8xf32>, vector<16x8xf32> -> vector<16x64xf32>
    %147 = arith.mulf %146, %4 : vector<16x64xf32>
    %148 = arith.addf %137, %147 : vector<16x64xf32>
    %149 = vector.extract_strided_slice %148 {offsets = [0, 0], sizes = [16, 32], strides = [1, 1]} : vector<16x64xf32> to vector<16x32xf32>
    %150 = vector.extract_strided_slice %148 {offsets = [0, 32], sizes = [16, 32], strides = [1, 1]} : vector<16x64xf32> to vector<16x32xf32>
    %151 = vector.extract_strided_slice %149 {offsets = [0, 0], sizes = [16, 16], strides = [1, 1]} : vector<16x32xf32> to vector<16x16xf32>
    %152 = arith.truncf %151 : vector<16x16xf32> to vector<16x16xbf16>
    %153 = vector.extract_strided_slice %150 {offsets = [0, 0], sizes = [16, 16], strides = [1, 1]} : vector<16x32xf32> to vector<16x16xf32>
    %154 = arith.truncf %153 : vector<16x16xf32> to vector<16x16xbf16>
    %155 = vector.extract_strided_slice %136 {offsets = [0, 0], sizes = [16, 16], strides = [1, 1]} : vector<16x32xf32> to vector<16x16xf32>
    %156 = arith.truncf %155 : vector<16x16xf32> to vector<16x16xbf16>
    %cst_50 = arith.constant dense<0.000000e+00> : vector<16x16xf32>
    %157 = tpu.matmul %152, %154, %cst_50 {dimension_numbers = #tpu.dot_dimension_numbers<[1], [1], [0], [0], [0, 0, 1, 0], [], []>} : vector<16x16xbf16>, vector<16x16xbf16>, vector<16x16xf32> -> vector<16x16xf32>
    %158 = arith.addf %157, %1 : vector<16x16xf32>
    %cst_51 = arith.constant dense<0xFF800000> : vector<16xf32>
    %159 = vector.multi_reduction <maximumf>, %158, %cst_51 [1] : vector<16x16xf32> to vector<16xf32>
    %160 = vector.shape_cast %159 : vector<16xf32> to vector<16x1xf32>
    %161 = vector.broadcast %160 : vector<16x1xf32> to vector<16x16xf32>
    %162 = arith.subf %158, %161 : vector<16x16xf32>
    %163 = math.exp %162 : vector<16x16xf32>
    %cst_52 = arith.constant dense<0.000000e+00> : vector<16xf32>
    %164 = vector.multi_reduction <add>, %163, %cst_52 [1] : vector<16x16xf32> to vector<16xf32>
    %165 = vector.shape_cast %164 : vector<16xf32> to vector<16x1xf32>
    %166 = tpu.reciprocal %165 {approx = true} : vector<16x1xf32> -> vector<16x1xf32>
    %167 = vector.broadcast %166 : vector<16x1xf32> to vector<16x16xf32>
    %168 = arith.mulf %163, %167 : vector<16x16xf32>
    %169 = arith.truncf %168 : vector<16x16xf32> to vector<16x16xbf16>
    %cst_53 = arith.constant dense<0.000000e+00> : vector<16x16xf32>
    %170 = tpu.matmul %169, %156, %cst_53 {dimension_numbers = #tpu.dot_dimension_numbers<[1], [0], [0], [1], [0, 0, 1, 1], [], []>} : vector<16x16xbf16>, vector<16x16xbf16>, vector<16x16xf32> -> vector<16x16xf32>
    %171 = vector.extract_strided_slice %149 {offsets = [0, 16], sizes = [16, 16], strides = [1, 1]} : vector<16x32xf32> to vector<16x16xf32>
    %172 = arith.truncf %171 : vector<16x16xf32> to vector<16x16xbf16>
    %173 = vector.extract_strided_slice %150 {offsets = [0, 16], sizes = [16, 16], strides = [1, 1]} : vector<16x32xf32> to vector<16x16xf32>
    %174 = arith.truncf %173 : vector<16x16xf32> to vector<16x16xbf16>
    %175 = vector.extract_strided_slice %136 {offsets = [0, 16], sizes = [16, 16], strides = [1, 1]} : vector<16x32xf32> to vector<16x16xf32>
    %176 = arith.truncf %175 : vector<16x16xf32> to vector<16x16xbf16>
    %cst_54 = arith.constant dense<0.000000e+00> : vector<16x16xf32>
    %177 = tpu.matmul %172, %174, %cst_54 {dimension_numbers = #tpu.dot_dimension_numbers<[1], [1], [0], [0], [0, 0, 1, 0], [], []>} : vector<16x16xbf16>, vector<16x16xbf16>, vector<16x16xf32> -> vector<16x16xf32>
    %178 = arith.addf %177, %1 : vector<16x16xf32>
    %cst_55 = arith.constant dense<0xFF800000> : vector<16xf32>
    %179 = vector.multi_reduction <maximumf>, %178, %cst_55 [1] : vector<16x16xf32> to vector<16xf32>
    %180 = vector.shape_cast %179 : vector<16xf32> to vector<16x1xf32>
    %181 = vector.broadcast %180 : vector<16x1xf32> to vector<16x16xf32>
    %182 = arith.subf %178, %181 : vector<16x16xf32>
    %183 = math.exp %182 : vector<16x16xf32>
    %cst_56 = arith.constant dense<0.000000e+00> : vector<16xf32>
    %184 = vector.multi_reduction <add>, %183, %cst_56 [1] : vector<16x16xf32> to vector<16xf32>
    %185 = vector.shape_cast %184 : vector<16xf32> to vector<16x1xf32>
    %186 = tpu.reciprocal %185 {approx = true} : vector<16x1xf32> -> vector<16x1xf32>
    %187 = vector.broadcast %186 : vector<16x1xf32> to vector<16x16xf32>
    %188 = arith.mulf %183, %187 : vector<16x16xf32>
    %189 = arith.truncf %188 : vector<16x16xf32> to vector<16x16xbf16>
    %cst_57 = arith.constant dense<0.000000e+00> : vector<16x16xf32>
    %190 = tpu.matmul %189, %176, %cst_57 {dimension_numbers = #tpu.dot_dimension_numbers<[1], [0], [0], [1], [0, 0, 1, 1], [], []>} : vector<16x16xbf16>, vector<16x16xbf16>, vector<16x16xf32> -> vector<16x16xf32>
    %191 = tpu.concatenate %170, %190 in 1 : vector<16x16xf32>, vector<16x16xf32> -> vector<16x32xf32>
    %192 = arith.truncf %191 : vector<16x32xf32> to vector<16x32xbf16>
    %c1_58 = arith.constant 1 : index
    %c0_59 = arith.constant 0 : index
    %c0_60 = arith.constant 0 : index
    %193 = vector.load %arg5[%c1_58, %c0_59, %c0_60] : memref<2x32x32xbf16, #tpu.memory_space<vmem>>, vector<1x32x32xbf16>
    %194 = vector.shape_cast %193 : vector<1x32x32xbf16> to vector<32x32xbf16>
    %cst_61 = arith.constant dense<0.000000e+00> : vector<16x32xf32>
    %195 = tpu.matmul %192, %194, %cst_61 {dimension_numbers = #tpu.dot_dimension_numbers<[1], [0], [0], [1], [0, 0, 1, 1], [], []>} : vector<16x32xbf16>, vector<32x32xbf16>, vector<16x32xf32> -> vector<16x32xf32>
    %196 = arith.addf %116, %195 : vector<16x32xf32>
    %197 = arith.mulf %196, %196 : vector<16x32xf32>
    %cst_62 = arith.constant dense<0.000000e+00> : vector<16xf32>
    %198 = vector.multi_reduction <add>, %197, %cst_62 [1] : vector<16x32xf32> to vector<16xf32>
    %199 = vector.shape_cast %198 : vector<16xf32> to vector<16x1xf32>
    %cst_63 = arith.constant 3.200000e+01 : f32
    %200 = vector.broadcast %cst_63 : f32 to vector<16x1xf32>
    %201 = arith.divf %199, %200 : vector<16x1xf32>
    %cst_64 = arith.constant 9.99999997E-7 : f32
    %202 = vector.broadcast %cst_64 : f32 to vector<16x1xf32>
    %203 = arith.addf %201, %202 : vector<16x1xf32>
    %204 = math.rsqrt %203 : vector<16x1xf32>
    %205 = vector.broadcast %204 : vector<16x1xf32> to vector<16x32xf32>
    %206 = arith.mulf %196, %205 : vector<16x32xf32>
    %c1_65 = arith.constant 1 : index
    %c0_66 = arith.constant 0 : index
    %c0_67 = arith.constant 0 : index
    %207 = vector.load %arg6[%c1_65, %c0_66, %c0_67] : memref<2x1x32xf32, #tpu.memory_space<vmem>>, vector<1x1x32xf32>
    %208 = vector.shape_cast %207 : vector<1x1x32xf32> to vector<1x32xf32>
    %209 = vector.broadcast %208 : vector<1x32xf32> to vector<16x32xf32>
    %210 = arith.mulf %206, %209 : vector<16x32xf32>
    %211 = arith.truncf %210 : vector<16x32xf32> to vector<16x32xbf16>
    %c1_68 = arith.constant 1 : index
    %c0_69 = arith.constant 0 : index
    %c0_70 = arith.constant 0 : index
    %212 = vector.load %arg7[%c1_68, %c0_69, %c0_70] : memref<2x32x128xbf16, #tpu.memory_space<vmem>>, vector<1x32x128xbf16>
    %213 = vector.shape_cast %212 : vector<1x32x128xbf16> to vector<32x128xbf16>
    %cst_71 = arith.constant dense<0.000000e+00> : vector<16x128xf32>
    %214 = tpu.matmul %211, %213, %cst_71 {dimension_numbers = #tpu.dot_dimension_numbers<[1], [0], [0], [1], [0, 0, 1, 1], [], []>} : vector<16x32xbf16>, vector<32x128xbf16>, vector<16x128xf32> -> vector<16x128xf32>
    %215 = vector.extract_strided_slice %214 {offsets = [0, 0], sizes = [16, 64], strides = [1, 1]} : vector<16x128xf32> to vector<16x64xf32>
    %216 = vector.extract_strided_slice %214 {offsets = [0, 64], sizes = [16, 64], strides = [1, 1]} : vector<16x128xf32> to vector<16x64xf32>
    %217 = arith.negf %215 : vector<16x64xf32>
    %218 = math.exp %217 : vector<16x64xf32>
    %cst_72 = arith.constant 1.000000e+00 : f32
    %219 = vector.broadcast %cst_72 : f32 to vector<16x64xf32>
    %220 = arith.addf %219, %218 : vector<16x64xf32>
    %221 = arith.divf %219, %220 : vector<16x64xf32>
    %222 = arith.mulf %215, %221 : vector<16x64xf32>
    %223 = arith.mulf %222, %216 : vector<16x64xf32>
    %224 = arith.truncf %223 : vector<16x64xf32> to vector<16x64xbf16>
    %c1_73 = arith.constant 1 : index
    %c0_74 = arith.constant 0 : index
    %c0_75 = arith.constant 0 : index
    %225 = vector.load %arg8[%c1_73, %c0_74, %c0_75] : memref<2x64x32xbf16, #tpu.memory_space<vmem>>, vector<1x64x32xbf16>
    %226 = vector.shape_cast %225 : vector<1x64x32xbf16> to vector<64x32xbf16>
    %cst_76 = arith.constant dense<0.000000e+00> : vector<16x32xf32>
    %227 = tpu.matmul %224, %226, %cst_76 {dimension_numbers = #tpu.dot_dimension_numbers<[1], [0], [0], [1], [0, 0, 1, 1], [], []>} : vector<16x64xbf16>, vector<64x32xbf16>, vector<16x32xf32> -> vector<16x32xf32>
    %228 = arith.addf %196, %227 : vector<16x32xf32>
    %c0_77 = arith.constant 0 : index
    %c0_78 = arith.constant 0 : index
    %229 = vector.load %arg9[%c0_77, %c0_78] : memref<16x32xf32, #tpu.memory_space<vmem>>, vector<16x32xf32>
    tpu.vector_store %arg9[%c0_77, %c0_78], %228 {strides = array<i32>} : memref<16x32xf32, #tpu.memory_space<vmem>>, vector<16x32xf32>,
    return
  }
}

</mosaic_0001>

<llo_original>
// kernel: tile.38
$region0: #{tile.38}
  #allocation0 [shape = 's32[1]{0}', space=sflag, size = 0x4, scoped, tag = 'scoped memory for tile.38']
  %s0 = inlined_call_operand.vmem [shape: f32[8,16], index: 0, kind: input, shape index: {}]
  %s1 = inlined_call_operand.vmem [shape: f32[2,8,2,16], index: 1, kind: output, shape index: {}]
  // Predicated region
  $region2: #{tile.38} parent=0 // pred_check
    _
  $region3: #{tile.38} parent=0 // pred_check_branch
    %3 = sbr.rel (0) target = $region5
  $region4: #{tile.38} parent=0 // pred_region
    _
  $region5: #{tile.38} parent=0 // pred_fallthru
    _
  %v4 = vld [vmem:[%s0] ss:$0 sm:$0xff]
  %5 = vst [vmem:[%s1] sm:$0x3] %v4
  %s6 = scalar_lea.vmem %s1, 16
  %7 = vst [vmem:[%s6] sm:$0x3] %v4
  %s8 = scalar_lea.vmem %s0, 1
  %v9 = vld [vmem:[%s8] ss:$0 sm:$0xff]
  %s10 = scalar_lea.vmem %s1, 2
  %11 = vst [vmem:[%s10] sm:$0x3] %v9
  %s12 = scalar_lea.vmem %s1, 18
  %13 = vst [vmem:[%s12] sm:$0x3] %v9
  %s14 = scalar_lea.vmem %s0, 2
  %v15 = vld [vmem:[%s14] ss:$0 sm:$0xff]
  %s16 = scalar_lea.vmem %s1, 4
  %17 = vst [vmem:[%s16] sm:$0x3] %v15
  %s18 = scalar_lea.vmem %s1, 20
  %19 = vst [vmem:[%s18] sm:$0x3] %v15
  %s20 = scalar_lea.vmem %s0, 3
  %v21 = vld [vmem:[%s20] ss:$0 sm:$0xff]
  %s22 = scalar_lea.vmem %s1, 6
  %23 = vst [vmem:[%s22] sm:$0x3] %v21
  %s24 = scalar_lea.vmem %s1, 22
  %25 = vst [vmem:[%s24] sm:$0x3] %v21
  %s26 = scalar_lea.vmem %s0, 4
  %v27 = vld [vmem:[%s26] ss:$0 sm:$0xff]
  %s28 = scalar_lea.vmem %s1, 8
  %29 = vst [vmem:[%s28] sm:$0x3] %v27
  %s30 = scalar_lea.vmem %s1, 24
  %31 = vst [vmem:[%s30] sm:$0x3] %v27
  %s32 = scalar_lea.vmem %s0, 5
  %v33 = vld [vmem:[%s32] ss:$0 sm:$0xff]
  %s34 = scalar_lea.vmem %s1, 10
  %35 = vst [vmem:[%s34] sm:$0x3] %v33
  %s36 = scalar_lea.vmem %s1, 26
  %37 = vst [vmem:[%s36] sm:$0x3] %v33
  %s38 = scalar_lea.vmem %s0, 6
  %v39 = vld [vmem:[%s38] ss:$0 sm:$0xff]
  %s40 = scalar_lea.vmem %s1, 12
  %41 = vst [vmem:[%s40] sm:$0x3] %v39
  %s42 = scalar_lea.vmem %s1, 28
  %43 = vst [vmem:[%s42] sm:$0x3] %v39
  %s44 = scalar_lea.vmem %s0, 7
  %v45 = vld [vmem:[%s44] ss:$0 sm:$0xff]
  %s46 = scalar_lea.vmem %s1, 14
  %47 = vst [vmem:[%s46] sm:$0x3] %v45
  %s48 = scalar_lea.vmem %s1, 30
  %49 = vst [vmem:[%s48] sm:$0x3] %v45

// kernel: tile.39
$region0: #{tile.39}
  %s0 = inlined_call_operand.vmem [shape: f32[2,8,2,16], index: 0, kind: input, shape index: {}]
  %s1 = inlined_call_operand.vmem [shape: f32[16,32], index: 1, kind: output, shape index: {}]
  $region1: #{tile.39} parent=0
    #allocation0 [shape = 'u8[65536]{0}', space=vmem, size = 0x10000, scoped, tag = 'scoped mem for input reshape']
    %s3 = sshllo.u32 0, 2
    %s4 = smul.addr 2, 15
    %s5 = scalar_lea.vmem %s0, %s4
    %v6 = vld [vmem:[%s5] sm:%s3]
    %s7 = scalar_lea.vmem [#allocation0], 120
    %8 = vst [vmem:[%s7] sm:%s3] %v6
    %s9 = smul.addr 2, 14
    %s10 = scalar_lea.vmem %s0, %s9
    %v11 = vld [vmem:[%s10] sm:%s3]
    %s12 = scalar_lea.vmem [#allocation0], 112
    %13 = vst [vmem:[%s12] sm:%s3] %v11
    %s14 = smul.addr 2, 13
    %s15 = scalar_lea.vmem %s0, %s14
    %v16 = vld [vmem:[%s15] sm:%s3]
    %s17 = scalar_lea.vmem [#allocation0], 104
    %18 = vst [vmem:[%s17] sm:%s3] %v16
    %s19 = smul.addr 2, 12
    %s20 = scalar_lea.vmem %s0, %s19
    %v21 = vld [vmem:[%s20] sm:%s3]
    %s22 = scalar_lea.vmem [#allocation0], 96
    %23 = vst [vmem:[%s22] sm:%s3] %v21
    %s24 = smul.addr 2, 11
    %s25 = scalar_lea.vmem %s0, %s24
    %v26 = vld [vmem:[%s25] sm:%s3]
    %s27 = scalar_lea.vmem [#allocation0], 88
    %28 = vst [vmem:[%s27] sm:%s3] %v26
    %s29 = smul.addr 2, 10
    %s30 = scalar_lea.vmem %s0, %s29
    %v31 = vld [vmem:[%s30] sm:%s3]
    %s32 = scalar_lea.vmem [#allocation0], 80
    %33 = vst [vmem:[%s32] sm:%s3] %v31
    %s34 = smul.addr 2, 9
    %s35 = scalar_lea.vmem %s0, %s34
    %v36 = vld [vmem:[%s35] sm:%s3]
    %s37 = scalar_lea.vmem [#allocation0], 72
    %38 = vst [vmem:[%s37] sm:%s3] %v36
    %s39 = smul.addr 2, 8
    %s40 = scalar_lea.vmem %s0, %s39
    %v41 = vld [vmem:[%s40] sm:%s3]
    %s42 = scalar_lea.vmem [#allocation0], 64
    %43 = vst [vmem:[%s42] sm:%s3] %v41
    %s44 = smul.addr 2, 7
    %s45 = scalar_lea.vmem %s0, %s44
    %v46 = vld [vmem:[%s45] sm:%s3]
    %s47 = scalar_lea.vmem [#allocation0], 56
    %48 = vst [vmem:[%s47] sm:%s3] %v46
    %s49 = smul.addr 2, 6
    %s50 = scalar_lea.vmem %s0, %s49
    %v51 = vld [vmem:[%s50] sm:%s3]
    %s52 = scalar_lea.vmem [#allocation0], 48
    %53 = vst [vmem:[%s52] sm:%s3] %v51
    %s54 = smul.addr 2, 5
    %s55 = scalar_lea.vmem %s0, %s54
    %v56 = vld [vmem:[%s55] sm:%s3]
    %s57 = scalar_lea.vmem [#allocation0], 40
    %58 = vst [vmem:[%s57] sm:%s3] %v56
    %s59 = smul.addr 2, 4
    %s60 = scalar_lea.vmem %s0, %s59
    %v61 = vld [vmem:[%s60] sm:%s3]
    %s62 = scalar_lea.vmem [#allocation0], 32
    %63 = vst [vmem:[%s62] sm:%s3] %v61
    %s64 = smul.addr 2, 3
    %s65 = scalar_lea.vmem %s0, %s64
    %v66 = vld [vmem:[%s65] sm:%s3]
    %s67 = scalar_lea.vmem [#allocation0], 24
    %68 = vst [vmem:[%s67] sm:%s3] %v66
    %s69 = smul.addr 2, 2
    %s70 = scalar_lea.vmem %s0, %s69
    %v71 = vld [vmem:[%s70] sm:%s3]
    %s72 = scalar_lea.vmem [#allocation0], 16
    %73 = vst [vmem:[%s72] sm:%s3] %v71
    %s74 = scalar_lea.vmem %s0, 2
    %v75 = vld [vmem:[%s74] sm:%s3]
    %s76 = scalar_lea.vmem [#allocation0], 8
    %77 = vst [vmem:[%s76] sm:%s3] %v75
    %v78 = vld [vmem:[%s0] sm:%s3]
    %79 = vst [vmem:[#allocation0] sm:%s3] %v78
    %v80 = vld [vmem:[#allocation0] ss:$8 sm:$0xf]
    %v81 = vld [vmem:[#allocation0] ss:$8 sm:$0xf0]
    %vm82 = vcmask 1047556
    %v83 = vsel %vm82, %v81, %v80
    %vm84 = vcmask 130048
    %85 = vst.msk [vmem:[%s1] sm:$0xff] %vm84, %v83
    %s86 = scalar_lea.vmem [#allocation0], 64
    %v87 = vld [vmem:[%s86] ss:$8 sm:$0xf]
    %s88 = scalar_lea.vmem [#allocation0], 64
    %v89 = vld [vmem:[%s88] ss:$8 sm:$0xf0]
    %vm90 = vcmask 1047556
    %v91 = vsel %vm90, %v89, %v87
    %vm92 = vcmask 130048
    %s93 = scalar_lea.vmem %s1, 8
    %94 = vst.msk [vmem:[%s93] sm:$0xff] %vm92, %v91
    %s95 = scalar_lea.vmem [#allocation0], 1
    %v96 = vld [vmem:[%s95] ss:$8 sm:$0xf]
    %s97 = scalar_lea.vmem [#allocation0], 1
    %v98 = vld [vmem:[%s97] ss:$8 sm:$0xf0]
    %vm99 = vcmask 1047556
    %v100 = vsel %vm99, %v98, %v96
    %101 = vrot.lane.b32.xlu0 %v100, 16
    %v102 = vpop.permute.xlu0 %101
    %vm103 = vcmask 261248
    %104 = vst.msk [vmem:[%s1] sm:$0xff] %vm103, %v102
    %s105 = scalar_lea.vmem [#allocation0], 65
    %v106 = vld [vmem:[%s105] ss:$8 sm:$0xf]
    %s107 = scalar_lea.vmem [#allocation0], 65
    %v108 = vld [vmem:[%s107] ss:$8 sm:$0xf0]
    %vm109 = vcmask 1047556
    %v110 = vsel %vm109, %v108, %v106
    %111 = vrot.lane.b32.xlu0 %v110, 16
    %v112 = vpop.permute.xlu0 %111
    %vm113 = vcmask 261248
    %s114 = scalar_lea.vmem %s1, 8
    %115 = vst.msk [vmem:[%s114] sm:$0xff] %vm113, %v112

// kernel: llama_first_half.1
$region0: #{llama_first_half.1}
  #allocation0 [shape = 'u32[]', space=smem, size = 0x4, offset = 0x4, fixed_abs, tag = 'smem constant byte address 0x4 - core index']
  #allocation1 [shape = 'u32[144,128]{1,0:T(1,128)}', space=vmem, size = 0x12000, scoped, tag = 'internal scratch']
  %s0 = inlined_call_operand.vmem [shape: f32[16,32], index: 0, kind: input, shape index: {}]
  %s1 = inlined_call_operand.vmem [shape: f32[16,16], index: 1, kind: input, shape index: {}]
  %s2 = inlined_call_operand.vmem [shape: f32[16,128], index: 2, kind: input, shape index: {}]
  %s3 = inlined_call_operand.vmem [shape: f32[2,1,32], index: 3, kind: input, shape index: {}]
  %s4 = inlined_call_operand.vmem [shape: bf16[2,32,96], index: 4, kind: input, shape index: {}]
  %s5 = inlined_call_operand.vmem [shape: bf16[2,32,32], index: 5, kind: input, shape index: {}]
  %s6 = inlined_call_operand.vmem [shape: f32[2,1,32], index: 6, kind: input, shape index: {}]
  %s7 = inlined_call_operand.vmem [shape: bf16[2,32,128], index: 7, kind: input, shape index: {}]
  %s8 = inlined_call_operand.vmem [shape: bf16[2,64,32], index: 8, kind: input, shape index: {}]
  %s9 = inlined_call_operand.hbm [shape: f32[16,32], index: 9, kind: output, shape index: {}]
  %s10 = sld [smem:[#allocation0]]
  $region46: #{llama_first_half.1} parent=0
    _
  %s12 = ssub.s32 1, %s10
  %s13 = scalar_select 0, %s12, %s10
  $region1: #{llama_first_half.1} parent=0
    #allocation2 [shape = 'u8[8192]{0}', space=vmem, size = 0x2000, scoped, tag = 'output window, operand 0, single buffered']
    #allocation3 [shape = 's32[1]{0}', space=sflag, size = 0x4, scoped, tag = 'scoped memory for llama_first_half.1']
    %14 = vsyncpa [#allocation3], 0
    // Predicated region
    $region2: #{llama_first_half.1} parent=1 // pred_check
      _
    $region3: #{llama_first_half.1} parent=1 // pred_check_branch
      %16 = sbr.rel (0) target = $region5
    $region4: #{llama_first_half.1} parent=1 // pred_region
      _
    $region5: #{llama_first_half.1} parent=1 // pred_fallthru
      _
    // Predicated region
    $region6: #{llama_first_half.1} parent=1 // pred_check
      _
    $region7: #{llama_first_half.1} parent=1 // pred_check_branch
      %18 = sbr.rel (0) target = $region9
    $region8: #{llama_first_half.1} parent=1 // pred_region
      _
    $region9: #{llama_first_half.1} parent=1 // pred_fallthru
      _
    // Predicated region
    $region10: #{llama_first_half.1} parent=1 // pred_check
      _
    $region11: #{llama_first_half.1} parent=1 // pred_check_branch
      %20 = sbr.rel (0) target = $region13
    $region12: #{llama_first_half.1} parent=1 // pred_region
      _
    $region13: #{llama_first_half.1} parent=1 // pred_fallthru
      _
    // Predicated region
    $region14: #{llama_first_half.1} parent=1 // pred_check
      _
    $region15: #{llama_first_half.1} parent=1 // pred_check_branch
      %22 = sbr.rel (0) target = $region17
    $region16: #{llama_first_half.1} parent=1 // pred_region
      _
    $region17: #{llama_first_half.1} parent=1 // pred_fallthru
      _
    // Predicated region
    $region18: #{llama_first_half.1} parent=1 // pred_check
      _
    $region19: #{llama_first_half.1} parent=1 // pred_check_branch
      %24 = sbr.rel (0) target = $region21
    $region20: #{llama_first_half.1} parent=1 // pred_region
      _
    $region21: #{llama_first_half.1} parent=1 // pred_fallthru
      _
    // Predicated region
    $region22: #{llama_first_half.1} parent=1 // pred_check
      _
    $region23: #{llama_first_half.1} parent=1 // pred_check_branch
      %26 = sbr.rel (0) target = $region25
    $region24: #{llama_first_half.1} parent=1 // pred_region
      _
    $region25: #{llama_first_half.1} parent=1 // pred_fallthru
      _
    // Predicated region
    $region26: #{llama_first_half.1} parent=1 // pred_check
      _
    $region27: #{llama_first_half.1} parent=1 // pred_check_branch
      %28 = sbr.rel (0) target = $region29
    $region28: #{llama_first_half.1} parent=1 // pred_region
      _
    $region29: #{llama_first_half.1} parent=1 // pred_fallthru
      _
    // Predicated region
    $region30: #{llama_first_half.1} parent=1 // pred_check
      _
    $region31: #{llama_first_half.1} parent=1 // pred_check_branch
      %30 = sbr.rel (0) target = $region33
    $region32: #{llama_first_half.1} parent=1 // pred_region
      _
    $region33: #{llama_first_half.1} parent=1 // pred_fallthru
      _
    // Predicated region
    $region34: #{llama_first_half.1} parent=1 // pred_check
      _
    $region35: #{llama_first_half.1} parent=1 // pred_check_branch
      %32 = sbr.rel (0) target = $region37
    $region36: #{llama_first_half.1} parent=1 // pred_region
      _
    $region37: #{llama_first_half.1} parent=1 // pred_fallthru
      _
    %v34 = vld [vmem:[%s0] sm:$0xff]
    %v35 = vld [vmem:[%s0 + $0x8] sm:$0xff]
    %v36 = vld [vmem:[%s1] sm:$0xff]
    %v37 = vld [vmem:[%s1 + $0x8] sm:$0xff]
    %v38 = vld [vmem:[%s2] sm:$0xff]
    %v39 = vld [vmem:[%s2 + $0x8] sm:$0xff]
    %v40 = vmul.f32 %v34, %v34
    %v41 = vmul.f32 %v35, %v35
    %vm42 = vcmask 261120
    %v43 = vsel %vm42, %v40, 0.0
    %44 = vadd.xlane.f32.xlu0 %v43
    %v45 = vpop.xlane.xlu0 %44
    %v46 = vsel %vm42, %v41, 0.0
    %47 = vadd.xlane.f32.xlu0 %v46
    %v48 = vpop.xlane.xlu0 %47
    %v49 = vrcp.pop 32.0
    %v50 = vmul.f32 %v45, %v49
    %v51 = vmul.f32 %v48, %v49
    %v52 = vadd.f32 %v50, 1e-06
    %v53 = vadd.f32 %v51, 1e-06
    %v54 = vrsqrt.pop %v52
    %v55 = vrsqrt.pop %v53
    %v56 = vmul.f32 %v34, %v54
    %v57 = vmul.f32 %v35, %v55
    %v58 = vld [vmem:[%s3] sm:$0x1]
    %v60 = vlaneseq
    %v61 = vshrl.u32 %v60, 7
    %v62 = vsub.s32 0, %v61
    %v63 = vrot.slane %v58, %v62
    %v65 = vmul.f32 %v56, %v63
    %v66 = vmul.f32 %v57, %v63
    %v67 = vpack.c.bf16 %v66, %v65
    %v68 = vld [vmem:[%s4] sm:$0xf]
    %v69 = vld [vmem:[%s4 + $0x4] sm:$0xf]
    %v70 = vld [vmem:[%s4 + $0x8] sm:$0xf]
    %v71 = vld [vmem:[%s4 + $0xc] sm:$0xf]
    %v76 = vunpack.c.l.b16 %v68
    %v77 = vunpack.c.l.b16 %v69
    %v78 = vunpack.c.l.b16 %v70
    %v79 = vunpack.c.l.b16 %v71
    %v80 = vpack.c.b16 %v77, %v76
    %v81 = vpack.c.b16 %v79, %v78
    %v85 = vsel %vm42, %v67, 0
    %87 = vmatprep.subr.bf16.mxu0 0
    %88 = vmatpush1.bf16.msra.mxu0 %v80
    %89 = vmatprep.subr.bf16.mxu0 0
    %90 = vmatpush1.bf16.msra.mxu0 %v81
    %91 = vmatprep.subr.bf16.mxu0 0
    %92 = vmatpush1.bf16.msra.mxu0 0
    %93 = vmatprep.subr.bf16.mxu0 0
    %94 = vmatpush1.bf16.msra.mxu0 0
    %95 = vmatprep.subr.bf16.mxu0 0
    %96 = vmatpush1.bf16.msra.mxu0 0
    %97 = vmatprep.subr.bf16.mxu0 0
    %98 = vmatpush1.bf16.msra.mxu0 0
    %99 = vmatprep.subr.bf16.mxu0 0
    %100 = vmatpush1.bf16.msra.mxu0 0
    %101 = vmatprep.subr.bf16.mxu0 0
    %102 = vmatpush1.bf16.msra.mxu0 0
    %103 = vmatprep.subr.bf16.mxu0 0
    %104 = vmatpush1.bf16.msra.mxu0 0
    %105 = vmatprep.subr.bf16.mxu0 0
    %106 = vmatpush1.bf16.msra.mxu0 0
    %107 = vmatprep.subr.bf16.mxu0 0
    %108 = vmatpush1.bf16.msra.mxu0 0
    %109 = vmatprep.subr.bf16.mxu0 0
    %110 = vmatpush1.bf16.msra.mxu0 0
    %111 = vmatprep.subr.bf16.mxu0 0
    %112 = vmatpush1.bf16.msra.mxu0 0
    %113 = vmatprep.subr.bf16.mxu0 0
    %114 = vmatpush1.bf16.msra.mxu0 0
    %115 = vmatprep.subr.bf16.mxu0 0
    %116 = vmatpush1.bf16.msra.mxu0 0
    %117 = vmatprep.subr.bf16.mxu0 0
    %118 = vmatpush1.bf16.msra.mxu0 0
    %119 = vmatprep.mubr.bf16.mxu0 0
    %120 = vmatmul.mubr.bf16.gmra.mrb[0].mxu0 %v85
    %v121 = vpop.f32.mrb[0].mxu0
    %v122 = vadd.f32 0.0, %v121
    %v123 = vpop.f32.mrb[0].mxu0
    %v124 = vpop.f32.mrb[0].mxu0
    %v125 = vadd.f32 0.0, %v124
    %v126 = vpop.f32.mrb[0].mxu0
    %127 = vdwg.mxu0
    %v128 = vmul.f32 %v122, %v38
    %v129 = vmul.f32 %v125, %v39
    %132 = vrot.lane.b32.xlu0 %v122, 120
    %v133 = vpop.permute.xlu0 %132
    %134 = vrot.lane.b32.xlu0 %v125, 120
    %v135 = vpop.permute.xlu0 %134
    %138 = vrot.lane.b32.xlu0 %v122, 8
    %v139 = vpop.permute.xlu0 %138
    %140 = vrot.lane.b32.xlu0 %v125, 8
    %v141 = vpop.permute.xlu0 %140
    %vm144 = vcmask 64512
    %v145 = vsel %vm144, %v133, %v139
    %v146 = vsel %vm144, %v135, %v141
    %vm147 = vcmask 130048
    %v148 = vsel %vm147, %v145, %v133
    %v149 = vsel %vm147, %v146, %v135
    %vm150 = vcmask 195584
    %v151 = vsel %vm150, %v148, %v139
    %v152 = vsel %vm150, %v149, %v141
    %v153 = vsel %vm42, %v151, %v133
    %v154 = vsel %vm42, %v152, %v135
    %vm155 = vcmask 326656
    %v156 = vsel %vm155, %v153, %v139
    %v157 = vsel %vm155, %v154, %v141
    %vm158 = vcmask 392192
    %v159 = vsel %vm158, %v156, %v133
    %v160 = vsel %vm158, %v157, %v135
    %vm161 = vcmask 457728
    %v162 = vsel %vm161, %v159, %v139
    %v163 = vsel %vm161, %v160, %v141
    %166 = vrot.lane.b32.xlu0 %v38, 64
    %v167 = vpop.permute.xlu0 %166
    %168 = vrot.lane.b32.xlu0 %v39, 64
    %v169 = vpop.permute.xlu0 %168
    %v172 = vmul.f32 %v162, %v167
    %v173 = vmul.f32 %v163, %v169
    %v174 = vadd.f32 %v128, %v172
    %v175 = vadd.f32 %v129, %v173
    %v176 = vpack.c.bf16 %v175, %v174
    %v177 = vpack.c.bf16 %v125, %v122
    %179 = vrot.lane.b32.xlu0 %v176, 96
    %v180 = vpop.permute.xlu0 %179
    %v182 = vsel %vm147, %v176, 0
    %v185 = vsel %vm147, %v180, 0
    %187 = vmatprep.subr.bf16.mxu0 0
    %188 = vmatpush1.bf16.xpose.msra.mxu0 %v185
    %189 = vmatprep.subr.bf16.mxu0 0
    %190 = vmatpush1.bf16.xpose.msra.mxu0 0
    %191 = vmatprep.subr.bf16.mxu0 0
    %192 = vmatpush1.bf16.xpose.msra.mxu0 0
    %193 = vmatprep.subr.bf16.mxu0 0
    %194 = vmatpush1.bf16.xpose.msra.mxu0 0
    %195 = vmatprep.subr.bf16.mxu0 0
    %196 = vmatpush1.bf16.xpose.msra.mxu0 0
    %197 = vmatprep.subr.bf16.mxu0 0
    %198 = vmatpush1.bf16.xpose.msra.mxu0 0
    %199 = vmatprep.subr.bf16.mxu0 0
    %200 = vmatpush1.bf16.xpose.msra.mxu0 0
    %201 = vmatprep.subr.bf16.mxu0 0
    %202 = vmatpush1.bf16.xpose.msra.mxu0 0
    %203 = vmatprep.subr.bf16.mxu0 0
    %204 = vmatpush1.bf16.xpose.msra.mxu0 0
    %205 = vmatprep.subr.bf16.mxu0 0
    %206 = vmatpush1.bf16.xpose.msra.mxu0 0
    %207 = vmatprep.subr.bf16.mxu0 0
    %208 = vmatpush1.bf16.xpose.msra.mxu0 0
    %209 = vmatprep.subr.bf16.mxu0 0
    %210 = vmatpush1.bf16.xpose.msra.mxu0 0
    %211 = vmatprep.subr.bf16.mxu0 0
    %212 = vmatpush1.bf16.xpose.msra.mxu0 0
    %213 = vmatprep.subr.bf16.mxu0 0
    %214 = vmatpush1.bf16.xpose.msra.mxu0 0
    %215 = vmatprep.subr.bf16.mxu0 0
    %216 = vmatpush1.bf16.xpose.msra.mxu0 0
    %217 = vmatprep.subr.bf16.mxu0 0
    %218 = vmatpush1.bf16.xpose.msra.mxu0 0
    %219 = vmatprep.mubr.bf16.mxu0 0
    %220 = vmatmul.mubr.bf16.gmra.mrb[0].mxu0 %v182
    %v221 = vpop.f32.mrb[0].mxu0
    %v222 = vadd.f32 %v36, %v221
    %v223 = vpop.f32.mrb[0].mxu0
    %v224 = vpop.f32.mrb[0].mxu0
    %v225 = vadd.f32 %v37, %v224
    %v226 = vpop.f32.mrb[0].mxu0
    %227 = vdwg.mxu0
    %v228 = vsel %vm147, %v222, -inf
    %229 = vmax.xlane.f32.xlu0 %v228
    %v230 = vpop.xlane.xlu0 %229
    %v231 = vsel %vm147, %v225, -inf
    %232 = vmax.xlane.f32.xlu0 %v231
    %v233 = vpop.xlane.xlu0 %232
    %v234 = vsub.f32 %v222, %v230
    %v235 = vsub.f32 %v225, %v233
    %v236 = vmul.f32 %v234, 1.442695
    %v237 = vpow.pop %v236
    %v238 = vmul.f32 %v235, 1.442695
    %v239 = vpow.pop %v238
    %v240 = vsel %vm147, %v237, 0.0
    %241 = vadd.xlane.f32.xlu0 %v240
    %v242 = vpop.xlane.xlu0 %241
    %v243 = vsel %vm147, %v239, 0.0
    %244 = vadd.xlane.f32.xlu0 %v243
    %v245 = vpop.xlane.xlu0 %244
    %v246 = vrcp.pop %v242
    %v247 = vrcp.pop %v245
    %v248 = vmul.f32 %v237, %v246
    %v249 = vmul.f32 %v239, %v247
    %v250 = vpack.c.bf16 %v249, %v248
    %252 = vrot.lane.b32.xlu0 %v177, 64
    %v253 = vpop.permute.xlu0 %252
    %v256 = vsel %vm147, %v250, 0
    %258 = vmatprep.subr.bf16.mxu0 0
    %259 = vmatpush1.bf16.msra.mxu0 %v253
    %260 = vmatprep.subr.bf16.mxu0 0
    %261 = vmatpush1.bf16.msra.mxu0 0
    %262 = vmatprep.subr.bf16.mxu0 0
    %263 = vmatpush1.bf16.msra.mxu0 0
    %264 = vmatprep.subr.bf16.mxu0 0
    %265 = vmatpush1.bf16.msra.mxu0 0
    %266 = vmatprep.subr.bf16.mxu0 0
    %267 = vmatpush1.bf16.msra.mxu0 0
    %268 = vmatprep.subr.bf16.mxu0 0
    %269 = vmatpush1.bf16.msra.mxu0 0
    %270 = vmatprep.subr.bf16.mxu0 0
    %271 = vmatpush1.bf16.msra.mxu0 0
    %272 = vmatprep.subr.bf16.mxu0 0
    %273 = vmatpush1.bf16.msra.mxu0 0
    %274 = vmatprep.subr.bf16.mxu0 0
    %275 = vmatpush1.bf16.msra.mxu0 0
    %276 = vmatprep.subr.bf16.mxu0 0
    %277 = vmatpush1.bf16.msra.mxu0 0
    %278 = vmatprep.subr.bf16.mxu0 0
    %279 = vmatpush1.bf16.msra.mxu0 0
    %280 = vmatprep.subr.bf16.mxu0 0
    %281 = vmatpush1.bf16.msra.mxu0 0
    %282 = vmatprep.subr.bf16.mxu0 0
    %283 = vmatpush1.bf16.msra.mxu0 0
    %284 = vmatprep.subr.bf16.mxu0 0
    %285 = vmatpush1.bf16.msra.mxu0 0
    %286 = vmatprep.subr.bf16.mxu0 0
    %287 = vmatpush1.bf16.msra.mxu0 0
    %288 = vmatprep.subr.bf16.mxu0 0
    %289 = vmatpush1.bf16.msra.mxu0 0
    %290 = vmatprep.mubr.bf16.mxu0 0
    %291 = vmatmul.mubr.bf16.gmra.mrb[0].mxu0 %v256
    %v292 = vpop.f32.mrb[0].mxu0
    %v293 = vadd.f32 0.0, %v292
    %v294 = vpop.f32.mrb[0].mxu0
    %v295 = vpop.f32.mrb[0].mxu0
    %v296 = vadd.f32 0.0, %v295
    %v297 = vpop.f32.mrb[0].mxu0
    %298 = vdwg.mxu0
    %299 = vrot.lane.b32.xlu0 %v176, 112
    %v300 = vpop.permute.xlu0 %299
    %301 = vrot.lane.b32.xlu0 %v176, 80
    %v302 = vpop.permute.xlu0 %301
    %v304 = vsel %vm147, %v300, 0
    %v307 = vsel %vm147, %v302, 0
    %309 = vmatprep.subr.bf16.mxu0 0
    %310 = vmatpush1.bf16.xpose.msra.mxu0 %v307
    %311 = vmatprep.subr.bf16.mxu0 0
    %312 = vmatpush1.bf16.xpose.msra.mxu0 0
    %313 = vmatprep.subr.bf16.mxu0 0
    %314 = vmatpush1.bf16.xpose.msra.mxu0 0
    %315 = vmatprep.subr.bf16.mxu0 0
    %316 = vmatpush1.bf16.xpose.msra.mxu0 0
    %317 = vmatprep.subr.bf16.mxu0 0
    %318 = vmatpush1.bf16.xpose.msra.mxu0 0
    %319 = vmatprep.subr.bf16.mxu0 0
    %320 = vmatpush1.bf16.xpose.msra.mxu0 0
    %321 = vmatprep.subr.bf16.mxu0 0
    %322 = vmatpush1.bf16.xpose.msra.mxu0 0
    %323 = vmatprep.subr.bf16.mxu0 0
    %324 = vmatpush1.bf16.xpose.msra.mxu0 0
    %325 = vmatprep.subr.bf16.mxu0 0
    %326 = vmatpush1.bf16.xpose.msra.mxu0 0
    %327 = vmatprep.subr.bf16.mxu0 0
    %328 = vmatpush1.bf16.xpose.msra.mxu0 0
    %329 = vmatprep.subr.bf16.mxu0 0
    %330 = vmatpush1.bf16.xpose.msra.mxu0 0
    %331 = vmatprep.subr.bf16.mxu0 0
    %332 = vmatpush1.bf16.xpose.msra.mxu0 0
    %333 = vmatprep.subr.bf16.mxu0 0
    %334 = vmatpush1.bf16.xpose.msra.mxu0 0
    %335 = vmatprep.subr.bf16.mxu0 0
    %336 = vmatpush1.bf16.xpose.msra.mxu0 0
    %337 = vmatprep.subr.bf16.mxu0 0
    %338 = vmatpush1.bf16.xpose.msra.mxu0 0
    %339 = vmatprep.subr.bf16.mxu0 0
    %340 = vmatpush1.bf16.xpose.msra.mxu0 0
    %341 = vmatprep.mubr.bf16.mxu0 0
    %342 = vmatmul.mubr.bf16.gmra.mrb[0].mxu0 %v304
    %v343 = vpop.f32.mrb[0].mxu0
    %v344 = vadd.f32 %v36, %v343
    %v345 = vpop.f32.mrb[0].mxu0
    %v346 = vpop.f32.mrb[0].mxu0
    %v347 = vadd.f32 %v37, %v346
    %v348 = vpop.f32.mrb[0].mxu0
    %349 = vdwg.mxu0
    %v350 = vsel %vm147, %v344, -inf
    %351 = vmax.xlane.f32.xlu0 %v350
    %v352 = vpop.xlane.xlu0 %351
    %v353 = vsel %vm147, %v347, -inf
    %354 = vmax.xlane.f32.xlu0 %v353
    %v355 = vpop.xlane.xlu0 %354
    %v356 = vsub.f32 %v344, %v352
    %v357 = vsub.f32 %v347, %v355
    %v358 = vmul.f32 %v356, 1.442695
    %v359 = vpow.pop %v358
    %v360 = vmul.f32 %v357, 1.442695
    %v361 = vpow.pop %v360
    %v362 = vsel %vm147, %v359, 0.0
    %363 = vadd.xlane.f32.xlu0 %v362
    %v364 = vpop.xlane.xlu0 %363
    %v365 = vsel %vm147, %v361, 0.0
    %366 = vadd.xlane.f32.xlu0 %v365
    %v367 = vpop.xlane.xlu0 %366
    %v368 = vrcp.pop %v364
    %v369 = vrcp.pop %v367
    %v370 = vmul.f32 %v359, %v368
    %v371 = vmul.f32 %v361, %v369
    %v372 = vpack.c.bf16 %v371, %v370
    %373 = vrot.lane.b32.xlu0 %v177, 48
    %v374 = vpop.permute.xlu0 %373
    %v377 = vsel %vm147, %v372, 0
    %379 = vmatprep.subr.bf16.mxu0 0
    %380 = vmatpush1.bf16.msra.mxu0 %v374
    %381 = vmatprep.subr.bf16.mxu0 0
    %382 = vmatpush1.bf16.msra.mxu0 0
    %383 = vmatprep.subr.bf16.mxu0 0
    %384 = vmatpush1.bf16.msra.mxu0 0
    %385 = vmatprep.subr.bf16.mxu0 0
    %386 = vmatpush1.bf16.msra.mxu0 0
    %387 = vmatprep.subr.bf16.mxu0 0
    %388 = vmatpush1.bf16.msra.mxu0 0
    %389 = vmatprep.subr.bf16.mxu0 0
    %390 = vmatpush1.bf16.msra.mxu0 0
    %391 = vmatprep.subr.bf16.mxu0 0
    %392 = vmatpush1.bf16.msra.mxu0 0
    %393 = vmatprep.subr.bf16.mxu0 0
    %394 = vmatpush1.bf16.msra.mxu0 0
    %395 = vmatprep.subr.bf16.mxu0 0
    %396 = vmatpush1.bf16.msra.mxu0 0
    %397 = vmatprep.subr.bf16.mxu0 0
    %398 = vmatpush1.bf16.msra.mxu0 0
    %399 = vmatprep.subr.bf16.mxu0 0
    %400 = vmatpush1.bf16.msra.mxu0 0
    %401 = vmatprep.subr.bf16.mxu0 0
    %402 = vmatpush1.bf16.msra.mxu0 0
    %403 = vmatprep.subr.bf16.mxu0 0
    %404 = vmatpush1.bf16.msra.mxu0 0
    %405 = vmatprep.subr.bf16.mxu0 0
    %406 = vmatpush1.bf16.msra.mxu0 0
    %407 = vmatprep.subr.bf16.mxu0 0
    %408 = vmatpush1.bf16.msra.mxu0 0
    %409 = vmatprep.subr.bf16.mxu0 0
    %410 = vmatpush1.bf16.msra.mxu0 0
    %411 = vmatprep.mubr.bf16.mxu0 0
    %412 = vmatmul.mubr.bf16.gmra.mrb[0].mxu0 %v377
    %v413 = vpop.f32.mrb[0].mxu0
    %v414 = vadd.f32 0.0, %v413
    %v415 = vpop.f32.mrb[0].mxu0
    %v416 = vpop.f32.mrb[0].mxu0
    %v417 = vadd.f32 0.0, %v416
    %v418 = vpop.f32.mrb[0].mxu0
    %419 = vdwg.mxu0
    %422 = vrot.lane.b32.xlu0 %v414, 16
    %v423 = vpop.permute.xlu0 %422
    %424 = vrot.lane.b32.xlu0 %v417, 16
    %v425 = vpop.permute.xlu0 %424
    %v428 = vsel %vm147, %v293, %v423
    %v429 = vsel %vm147, %v296, %v425
    %v430 = vpack.c.bf16 %v429, %v428
    %v431 = vld [vmem:[%s5] sm:$0xf]
    %v432 = vld [vmem:[%s5 + $0x4] sm:$0xf]
    %v433 = vld [vmem:[%s5 + $0x8] sm:$0xf]
    %v434 = vld [vmem:[%s5 + $0xc] sm:$0xf]
    %v439 = vunpack.c.l.b16 %v431
    %v440 = vunpack.c.l.b16 %v432
    %v441 = vunpack.c.l.b16 %v433
    %v442 = vunpack.c.l.b16 %v434
    %v443 = vpack.c.b16 %v440, %v439
    %v444 = vpack.c.b16 %v442, %v441
    %v448 = vsel %vm42, %v430, 0
    %450 = vmatprep.subr.bf16.mxu0 0
    %451 = vmatpush1.bf16.msra.mxu0 %v443
    %452 = vmatprep.subr.bf16.mxu0 0
    %453 = vmatpush1.bf16.msra.mxu0 %v444
    %454 = vmatprep.subr.bf16.mxu0 0
    %455 = vmatpush1.bf16.msra.mxu0 0
    %456 = vmatprep.subr.bf16.mxu0 0
    %457 = vmatpush1.bf16.msra.mxu0 0
    %458 = vmatprep.subr.bf16.mxu0 0
    %459 = vmatpush1.bf16.msra.mxu0 0
    %460 = vmatprep.subr.bf16.mxu0 0
    %461 = vmatpush1.bf16.msra.mxu0 0
    %462 = vmatprep.subr.bf16.mxu0 0
    %463 = vmatpush1.bf16.msra.mxu0 0
    %464 = vmatprep.subr.bf16.mxu0 0
    %465 = vmatpush1.bf16.msra.mxu0 0
    %466 = vmatprep.subr.bf16.mxu0 0
    %467 = vmatpush1.bf16.msra.mxu0 0
    %468 = vmatprep.subr.bf16.mxu0 0
    %469 = vmatpush1.bf16.msra.mxu0 0
    %470 = vmatprep.subr.bf16.mxu0 0
    %471 = vmatpush1.bf16.msra.mxu0 0
    %472 = vmatprep.subr.bf16.mxu0 0
    %473 = vmatpush1.bf16.msra.mxu0 0
    %474 = vmatprep.subr.bf16.mxu0 0
    %475 = vmatpush1.bf16.msra.mxu0 0
    %476 = vmatprep.subr.bf16.mxu0 0
    %477 = vmatpush1.bf16.msra.mxu0 0
    %478 = vmatprep.subr.bf16.mxu0 0
    %479 = vmatpush1.bf16.msra.mxu0 0
    %480 = vmatprep.subr.bf16.mxu0 0
    %481 = vmatpush1.bf16.msra.mxu0 0
    %482 = vmatprep.mubr.bf16.mxu0 0
    %483 = vmatmul.mubr.bf16.gmra.mrb[0].mxu0 %v448
    %v484 = vpop.f32.mrb[0].mxu0
    %v485 = vadd.f32 0.0, %v484
    %v486 = vpop.f32.mrb[0].mxu0
    %v487 = vpop.f32.mrb[0].mxu0
    %v488 = vadd.f32 0.0, %v487
    %v489 = vpop.f32.mrb[0].mxu0
    %490 = vdwg.mxu0
    %v491 = vadd.f32 %v34, %v485
    %v492 = vadd.f32 %v35, %v488
    %v493 = vmul.f32 %v491, %v491
    %v494 = vmul.f32 %v492, %v492
    %v495 = vsel %vm42, %v493, 0.0
    %496 = vadd.xlane.f32.xlu0 %v495
    %v497 = vpop.xlane.xlu0 %496
    %v498 = vsel %vm42, %v494, 0.0
    %499 = vadd.xlane.f32.xlu0 %v498
    %v500 = vpop.xlane.xlu0 %499
    %v501 = vmul.f32 %v497, %v49
    %v502 = vmul.f32 %v500, %v49
    %v503 = vadd.f32 %v501, 1e-06
    %v504 = vadd.f32 %v502, 1e-06
    %v505 = vrsqrt.pop %v503
    %v506 = vrsqrt.pop %v504
    %v507 = vmul.f32 %v491, %v505
    %v508 = vmul.f32 %v492, %v506
    %v509 = vld [vmem:[%s6] sm:$0x1]
    %v511 = vlaneseq
    %v512 = vshrl.u32 %v511, 7
    %v513 = vsub.s32 0, %v512
    %v514 = vrot.slane %v509, %v513
    %v516 = vmul.f32 %v507, %v514
    %v517 = vmul.f32 %v508, %v514
    %v518 = vpack.c.bf16 %v517, %v516
    %v519 = vld [vmem:[%s7] sm:$0xf]
    %v520 = vld [vmem:[%s7 + $0x4] sm:$0xf]
    %v521 = vld [vmem:[%s7 + $0x8] sm:$0xf]
    %v522 = vld [vmem:[%s7 + $0xc] sm:$0xf]
    %v527 = vunpack.c.l.b16 %v519
    %v528 = vunpack.c.l.b16 %v520
    %v529 = vunpack.c.l.b16 %v521
    %v530 = vunpack.c.l.b16 %v522
    %v531 = vpack.c.b16 %v528, %v527
    %v532 = vpack.c.b16 %v530, %v529
    %v536 = vsel %vm42, %v518, 0
    %538 = vmatprep.subr.bf16.mxu0 0
    %539 = vmatpush1.bf16.msra.mxu0 %v531
    %540 = vmatprep.subr.bf16.mxu0 0
    %541 = vmatpush1.bf16.msra.mxu0 %v532
    %542 = vmatprep.subr.bf16.mxu0 0
    %543 = vmatpush1.bf16.msra.mxu0 0
    %544 = vmatprep.subr.bf16.mxu0 0
    %545 = vmatpush1.bf16.msra.mxu0 0
    %546 = vmatprep.subr.bf16.mxu0 0
    %547 = vmatpush1.bf16.msra.mxu0 0
    %548 = vmatprep.subr.bf16.mxu0 0
    %549 = vmatpush1.bf16.msra.mxu0 0
    %550 = vmatprep.subr.bf16.mxu0 0
    %551 = vmatpush1.bf16.msra.mxu0 0
    %552 = vmatprep.subr.bf16.mxu0 0
    %553 = vmatpush1.bf16.msra.mxu0 0
    %554 = vmatprep.subr.bf16.mxu0 0
    %555 = vmatpush1.bf16.msra.mxu0 0
    %556 = vmatprep.subr.bf16.mxu0 0
    %557 = vmatpush1.bf16.msra.mxu0 0
    %558 = vmatprep.subr.bf16.mxu0 0
    %559 = vmatpush1.bf16.msra.mxu0 0
    %560 = vmatprep.subr.bf16.mxu0 0
    %561 = vmatpush1.bf16.msra.mxu0 0
    %562 = vmatprep.subr.bf16.mxu0 0
    %563 = vmatpush1.bf16.msra.mxu0 0
    %564 = vmatprep.subr.bf16.mxu0 0
    %565 = vmatpush1.bf16.msra.mxu0 0
    %566 = vmatprep.subr.bf16.mxu0 0
    %567 = vmatpush1.bf16.msra.mxu0 0
    %568 = vmatprep.subr.bf16.mxu0 0
    %569 = vmatpush1.bf16.msra.mxu0 0
    %570 = vmatprep.mubr.bf16.mxu0 0
    %571 = vmatmul.mubr.bf16.gmra.mrb[0].mxu0 %v536
    %v572 = vpop.f32.mrb[0].mxu0
    %v573 = vadd.f32 0.0, %v572
    %v574 = vpop.f32.mrb[0].mxu0
    %v575 = vpop.f32.mrb[0].mxu0
    %v576 = vadd.f32 0.0, %v575
    %v577 = vpop.f32.mrb[0].mxu0
    %578 = vdwg.mxu0
    %v579 = vxor.u32 %v573, 2147483648
    %v580 = vxor.u32 %v576, 2147483648
    %v581 = vmul.f32 %v579, 1.442695
    %v582 = vpow.pop %v581
    %v583 = vmul.f32 %v580, 1.442695
    %v584 = vpow.pop %v583
    %v585 = vadd.f32 %v582, 1.0
    %v586 = vadd.f32 %v584, 1.0
    %v587 = vrcp.pop %v585
    %v588 = vmul.f32 1.0, %v587
    %v589 = vrcp.pop %v586
    %v590 = vmul.f32 1.0, %v589
    %v591 = vmul.f32 %v573, %v588
    %v592 = vmul.f32 %v576, %v590
    %595 = vrot.lane.b32.xlu0 %v573, 64
    %v596 = vpop.permute.xlu0 %595
    %597 = vrot.lane.b32.xlu0 %v576, 64
    %v598 = vpop.permute.xlu0 %597
    %v601 = vmul.f32 %v591, %v596
    %v602 = vmul.f32 %v592, %v598
    %v603 = vpack.c.bf16 %v602, %v601
    %v604 = vld [vmem:[%s8] sm:$0xf]
    %v605 = vld [vmem:[%s8 + $0x4] sm:$0xf]
    %v606 = vld [vmem:[%s8 + $0x8] sm:$0xf]
    %v607 = vld [vmem:[%s8 + $0xc] sm:$0xf]
    %v608 = vld [vmem:[%s8 + $0x10] sm:$0xf]
    %v609 = vld [vmem:[%s8 + $0x14] sm:$0xf]
    %v610 = vld [vmem:[%s8 + $0x18] sm:$0xf]
    %v611 = vld [vmem:[%s8 + $0x1c] sm:$0xf]
    %v620 = vunpack.c.l.b16 %v604
    %v621 = vunpack.c.l.b16 %v605
    %v622 = vunpack.c.l.b16 %v606
    %v623 = vunpack.c.l.b16 %v607
    %v624 = vunpack.c.l.b16 %v608
    %v625 = vunpack.c.l.b16 %v609
    %v626 = vunpack.c.l.b16 %v610
    %v627 = vunpack.c.l.b16 %v611
    %v628 = vpack.c.b16 %v621, %v620
    %v629 = vpack.c.b16 %v623, %v622
    %v630 = vpack.c.b16 %v625, %v624
    %v631 = vpack.c.b16 %v627, %v626
    %vm636 = vcmask 523264
    %v638 = vsel %vm636, %v603, 0
    %640 = vmatprep.subr.bf16.mxu0 0
    %641 = vmatpush1.bf16.msra.mxu0 %v628
    %642 = vmatprep.subr.bf16.mxu0 0
    %643 = vmatpush1.bf16.msra.mxu0 %v629
    %644 = vmatprep.subr.bf16.mxu0 0
    %645 = vmatpush1.bf16.msra.mxu0 %v630
    %646 = vmatprep.subr.bf16.mxu0 0
    %647 = vmatpush1.bf16.msra.mxu0 %v631
    %648 = vmatprep.subr.bf16.mxu0 0
    %649 = vmatpush1.bf16.msra.mxu0 0
    %650 = vmatprep.subr.bf16.mxu0 0
    %651 = vmatpush1.bf16.msra.mxu0 0
    %652 = vmatprep.subr.bf16.mxu0 0
    %653 = vmatpush1.bf16.msra.mxu0 0
    %654 = vmatprep.subr.bf16.mxu0 0
    %655 = vmatpush1.bf16.msra.mxu0 0
    %656 = vmatprep.subr.bf16.mxu0 0
    %657 = vmatpush1.bf16.msra.mxu0 0
    %658 = vmatprep.subr.bf16.mxu0 0
    %659 = vmatpush1.bf16.msra.mxu0 0
    %660 = vmatprep.subr.bf16.mxu0 0
    %661 = vmatpush1.bf16.msra.mxu0 0
    %662 = vmatprep.subr.bf16.mxu0 0
    %663 = vmatpush1.bf16.msra.mxu0 0
    %664 = vmatprep.subr.bf16.mxu0 0
    %665 = vmatpush1.bf16.msra.mxu0 0
    %666 = vmatprep.subr.bf16.mxu0 0
    %667 = vmatpush1.bf16.msra.mxu0 0
    %668 = vmatprep.subr.bf16.mxu0 0
    %669 = vmatpush1.bf16.msra.mxu0 0
    %670 = vmatprep.subr.bf16.mxu0 0
    %671 = vmatpush1.bf16.msra.mxu0 0
    %672 = vmatprep.mubr.bf16.mxu0 0
    %673 = vmatmul.mubr.bf16.gmra.mrb[0].mxu0 %v638
    %v674 = vpop.f32.mrb[0].mxu0
    %v675 = vadd.f32 0.0, %v674
    %v676 = vpop.f32.mrb[0].mxu0
    %v677 = vpop.f32.mrb[0].mxu0
    %v678 = vadd.f32 0.0, %v677
    %v679 = vpop.f32.mrb[0].mxu0
    %680 = vdwg.mxu0
    %v681 = vadd.f32 %v491, %v675
    %v682 = vadd.f32 %v492, %v678
    %v683 = vmul.f32 %v681, %v681
    %v684 = vmul.f32 %v682, %v682
    %v685 = vsel %vm42, %v683, 0.0
    %686 = vadd.xlane.f32.xlu0 %v685
    %v687 = vpop.xlane.xlu0 %686
    %v688 = vsel %vm42, %v684, 0.0
    %689 = vadd.xlane.f32.xlu0 %v688
    %v690 = vpop.xlane.xlu0 %689
    %v691 = vmul.f32 %v687, %v49
    %v692 = vmul.f32 %v690, %v49
    %v693 = vadd.f32 %v691, 1e-06
    %v694 = vadd.f32 %v692, 1e-06
    %v695 = vrsqrt.pop %v693
    %v696 = vrsqrt.pop %v694
    %v697 = vmul.f32 %v681, %v695
    %v698 = vmul.f32 %v682, %v696
    %s699 = scalar_lea.vmem %s3, 1
    %v700 = vld [vmem:[%s699] sm:$0x1]
    %v702 = vlaneseq
    %v703 = vshrl.u32 %v702, 7
    %v704 = vsub.s32 0, %v703
    %v705 = vrot.slane %v700, %v704
    %v707 = vmul.f32 %v697, %v705
    %v708 = vmul.f32 %v698, %v705
    %v709 = vpack.c.bf16 %v708, %v707
    %s710 = scalar_lea.vmem %s4, 16
    %v711 = vld [vmem:[%s710] sm:$0xf]
    %v712 = vld [vmem:[%s710 + $0x4] sm:$0xf]
    %v713 = vld [vmem:[%s710 + $0x8] sm:$0xf]
    %v714 = vld [vmem:[%s710 + $0xc] sm:$0xf]
    %v719 = vunpack.c.l.b16 %v711
    %v720 = vunpack.c.l.b16 %v712
    %v721 = vunpack.c.l.b16 %v713
    %v722 = vunpack.c.l.b16 %v714
    %v723 = vpack.c.b16 %v720, %v719
    %v724 = vpack.c.b16 %v722, %v721
    %v728 = vsel %vm42, %v709, 0
    %730 = vmatprep.subr.bf16.mxu0 0
    %731 = vmatpush1.bf16.msra.mxu0 %v723
    %732 = vmatprep.subr.bf16.mxu0 0
    %733 = vmatpush1.bf16.msra.mxu0 %v724
    %734 = vmatprep.subr.bf16.mxu0 0
    %735 = vmatpush1.bf16.msra.mxu0 0
    %736 = vmatprep.subr.bf16.mxu0 0
    %737 = vmatpush1.bf16.msra.mxu0 0
    %738 = vmatprep.subr.bf16.mxu0 0
    %739 = vmatpush1.bf16.msra.mxu0 0
    %740 = vmatprep.subr.bf16.mxu0 0
    %741 = vmatpush1.bf16.msra.mxu0 0
    %742 = vmatprep.subr.bf16.mxu0 0
    %743 = vmatpush1.bf16.msra.mxu0 0
    %744 = vmatprep.subr.bf16.mxu0 0
    %745 = vmatpush1.bf16.msra.mxu0 0
    %746 = vmatprep.subr.bf16.mxu0 0
    %747 = vmatpush1.bf16.msra.mxu0 0
    %748 = vmatprep.subr.bf16.mxu0 0
    %749 = vmatpush1.bf16.msra.mxu0 0
    %750 = vmatprep.subr.bf16.mxu0 0
    %751 = vmatpush1.bf16.msra.mxu0 0
    %752 = vmatprep.subr.bf16.mxu0 0
    %753 = vmatpush1.bf16.msra.mxu0 0
    %754 = vmatprep.subr.bf16.mxu0 0
    %755 = vmatpush1.bf16.msra.mxu0 0
    %756 = vmatprep.subr.bf16.mxu0 0
    %757 = vmatpush1.bf16.msra.mxu0 0
    %758 = vmatprep.subr.bf16.mxu0 0
    %759 = vmatpush1.bf16.msra.mxu0 0
    %760 = vmatprep.subr.bf16.mxu0 0
    %761 = vmatpush1.bf16.msra.mxu0 0
    %762 = vmatprep.mubr.bf16.mxu0 0
    %763 = vmatmul.mubr.bf16.gmra.mrb[0].mxu0 %v728
    %v764 = vpop.f32.mrb[0].mxu0
    %v765 = vadd.f32 0.0, %v764
    %v766 = vpop.f32.mrb[0].mxu0
    %v767 = vpop.f32.mrb[0].mxu0
    %v768 = vadd.f32 0.0, %v767
    %v769 = vpop.f32.mrb[0].mxu0
    %770 = vdwg.mxu0
    %v771 = vmul.f32 %v765, %v38
    %v772 = vmul.f32 %v768, %v39
    %775 = vrot.lane.b32.xlu0 %v765, 120
    %v776 = vpop.permute.xlu0 %775
    %777 = vrot.lane.b32.xlu0 %v768, 120
    %v778 = vpop.permute.xlu0 %777
    %781 = vrot.lane.b32.xlu0 %v765, 8
    %v782 = vpop.permute.xlu0 %781
    %783 = vrot.lane.b32.xlu0 %v768, 8
    %v784 = vpop.permute.xlu0 %783
    %v787 = vsel %vm144, %v776, %v782
    %v788 = vsel %vm144, %v778, %v784
    %v789 = vsel %vm147, %v787, %v776
    %v790 = vsel %vm147, %v788, %v778
    %v791 = vsel %vm150, %v789, %v782
    %v792 = vsel %vm150, %v790, %v784
    %v793 = vsel %vm42, %v791, %v776
    %v794 = vsel %vm42, %v792, %v778
    %v795 = vsel %vm155, %v793, %v782
    %v796 = vsel %vm155, %v794, %v784
    %v797 = vsel %vm158, %v795, %v776
    %v798 = vsel %vm158, %v796, %v778
    %v799 = vsel %vm161, %v797, %v782
    %v800 = vsel %vm161, %v798, %v784
    %v801 = vmul.f32 %v799, %v167
    %v802 = vmul.f32 %v800, %v169
    %v803 = vadd.f32 %v771, %v801
    %v804 = vadd.f32 %v772, %v802
    %v805 = vpack.c.bf16 %v804, %v803
    %v806 = vpack.c.bf16 %v768, %v765
    %808 = vrot.lane.b32.xlu0 %v805, 96
    %v809 = vpop.permute.xlu0 %808
    %v811 = vsel %vm147, %v805, 0
    %v814 = vsel %vm147, %v809, 0
    %816 = vmatprep.subr.bf16.mxu0 0
    %817 = vmatpush1.bf16.xpose.msra.mxu0 %v814
    %818 = vmatprep.subr.bf16.mxu0 0
    %819 = vmatpush1.bf16.xpose.msra.mxu0 0
    %820 = vmatprep.subr.bf16.mxu0 0
    %821 = vmatpush1.bf16.xpose.msra.mxu0 0
    %822 = vmatprep.subr.bf16.mxu0 0
    %823 = vmatpush1.bf16.xpose.msra.mxu0 0
    %824 = vmatprep.subr.bf16.mxu0 0
    %825 = vmatpush1.bf16.xpose.msra.mxu0 0
    %826 = vmatprep.subr.bf16.mxu0 0
    %827 = vmatpush1.bf16.xpose.msra.mxu0 0
    %828 = vmatprep.subr.bf16.mxu0 0
    %829 = vmatpush1.bf16.xpose.msra.mxu0 0
    %830 = vmatprep.subr.bf16.mxu0 0
    %831 = vmatpush1.bf16.xpose.msra.mxu0 0
    %832 = vmatprep.subr.bf16.mxu0 0
    %833 = vmatpush1.bf16.xpose.msra.mxu0 0
    %834 = vmatprep.subr.bf16.mxu0 0
    %835 = vmatpush1.bf16.xpose.msra.mxu0 0
    %836 = vmatprep.subr.bf16.mxu0 0
    %837 = vmatpush1.bf16.xpose.msra.mxu0 0
    %838 = vmatprep.subr.bf16.mxu0 0
    %839 = vmatpush1.bf16.xpose.msra.mxu0 0
    %840 = vmatprep.subr.bf16.mxu0 0
    %841 = vmatpush1.bf16.xpose.msra.mxu0 0
    %842 = vmatprep.subr.bf16.mxu0 0
    %843 = vmatpush1.bf16.xpose.msra.mxu0 0
    %844 = vmatprep.subr.bf16.mxu0 0
    %845 = vmatpush1.bf16.xpose.msra.mxu0 0
    %846 = vmatprep.subr.bf16.mxu0 0
    %847 = vmatpush1.bf16.xpose.msra.mxu0 0
    %848 = vmatprep.mubr.bf16.mxu0 0
    %849 = vmatmul.mubr.bf16.gmra.mrb[0].mxu0 %v811
    %v850 = vpop.f32.mrb[0].mxu0
    %v851 = vadd.f32 %v36, %v850
    %v852 = vpop.f32.mrb[0].mxu0
    %v853 = vpop.f32.mrb[0].mxu0
    %v854 = vadd.f32 %v37, %v853
    %v855 = vpop.f32.mrb[0].mxu0
    %856 = vdwg.mxu0
    %v857 = vsel %vm147, %v851, -inf
    %858 = vmax.xlane.f32.xlu0 %v857
    %v859 = vpop.xlane.xlu0 %858
    %v860 = vsel %vm147, %v854, -inf
    %861 = vmax.xlane.f32.xlu0 %v860
    %v862 = vpop.xlane.xlu0 %861
    %v863 = vsub.f32 %v851, %v859
    %v864 = vsub.f32 %v854, %v862
    %v865 = vmul.f32 %v863, 1.442695
    %v866 = vpow.pop %v865
    %v867 = vmul.f32 %v864, 1.442695
    %v868 = vpow.pop %v867
    %v869 = vsel %vm147, %v866, 0.0
    %870 = vadd.xlane.f32.xlu0 %v869
    %v871 = vpop.xlane.xlu0 %870
    %v872 = vsel %vm147, %v868, 0.0
    %873 = vadd.xlane.f32.xlu0 %v872
    %v874 = vpop.xlane.xlu0 %873
    %v875 = vrcp.pop %v871
    %v876 = vrcp.pop %v874
    %v877 = vmul.f32 %v866, %v875
    %v878 = vmul.f32 %v868, %v876
    %v879 = vpack.c.bf16 %v878, %v877
    %881 = vrot.lane.b32.xlu0 %v806, 64
    %v882 = vpop.permute.xlu0 %881
    %v885 = vsel %vm147, %v879, 0
    %887 = vmatprep.subr.bf16.mxu0 0
    %888 = vmatpush1.bf16.msra.mxu0 %v882
    %889 = vmatprep.subr.bf16.mxu0 0
    %890 = vmatpush1.bf16.msra.mxu0 0
    %891 = vmatprep.subr.bf16.mxu0 0
    %892 = vmatpush1.bf16.msra.mxu0 0
    %893 = vmatprep.subr.bf16.mxu0 0
    %894 = vmatpush1.bf16.msra.mxu0 0
    %895 = vmatprep.subr.bf16.mxu0 0
    %896 = vmatpush1.bf16.msra.mxu0 0
    %897 = vmatprep.subr.bf16.mxu0 0
    %898 = vmatpush1.bf16.msra.mxu0 0
    %899 = vmatprep.subr.bf16.mxu0 0
    %900 = vmatpush1.bf16.msra.mxu0 0
    %901 = vmatprep.subr.bf16.mxu0 0
    %902 = vmatpush1.bf16.msra.mxu0 0
    %903 = vmatprep.subr.bf16.mxu0 0
    %904 = vmatpush1.bf16.msra.mxu0 0
    %905 = vmatprep.subr.bf16.mxu0 0
    %906 = vmatpush1.bf16.msra.mxu0 0
    %907 = vmatprep.subr.bf16.mxu0 0
    %908 = vmatpush1.bf16.msra.mxu0 0
    %909 = vmatprep.subr.bf16.mxu0 0
    %910 = vmatpush1.bf16.msra.mxu0 0
    %911 = vmatprep.subr.bf16.mxu0 0
    %912 = vmatpush1.bf16.msra.mxu0 0
    %913 = vmatprep.subr.bf16.mxu0 0
    %914 = vmatpush1.bf16.msra.mxu0 0
    %915 = vmatprep.subr.bf16.mxu0 0
    %916 = vmatpush1.bf16.msra.mxu0 0
    %917 = vmatprep.subr.bf16.mxu0 0
    %918 = vmatpush1.bf16.msra.mxu0 0
    %919 = vmatprep.mubr.bf16.mxu0 0
    %920 = vmatmul.mubr.bf16.gmra.mrb[0].mxu0 %v885
    %v921 = vpop.f32.mrb[0].mxu0
    %v922 = vadd.f32 0.0, %v921
    %v923 = vpop.f32.mrb[0].mxu0
    %v924 = vpop.f32.mrb[0].mxu0
    %v925 = vadd.f32 0.0, %v924
    %v926 = vpop.f32.mrb[0].mxu0
    %927 = vdwg.mxu0
    %928 = vrot.lane.b32.xlu0 %v805, 112
    %v929 = vpop.permute.xlu0 %928
    %930 = vrot.lane.b32.xlu0 %v805, 80
    %v931 = vpop.permute.xlu0 %930
    %v933 = vsel %vm147, %v929, 0
    %v936 = vsel %vm147, %v931, 0
    %938 = vmatprep.subr.bf16.mxu0 0
    %939 = vmatpush1.bf16.xpose.msra.mxu0 %v936
    %940 = vmatprep.subr.bf16.mxu0 0
    %941 = vmatpush1.bf16.xpose.msra.mxu0 0
    %942 = vmatprep.subr.bf16.mxu0 0
    %943 = vmatpush1.bf16.xpose.msra.mxu0 0
    %944 = vmatprep.subr.bf16.mxu0 0
    %945 = vmatpush1.bf16.xpose.msra.mxu0 0
    %946 = vmatprep.subr.bf16.mxu0 0
    %947 = vmatpush1.bf16.xpose.msra.mxu0 0
    %948 = vmatprep.subr.bf16.mxu0 0
    %949 = vmatpush1.bf16.xpose.msra.mxu0 0
    %950 = vmatprep.subr.bf16.mxu0 0
    %951 = vmatpush1.bf16.xpose.msra.mxu0 0
    %952 = vmatprep.subr.bf16.mxu0 0
    %953 = vmatpush1.bf16.xpose.msra.mxu0 0
    %954 = vmatprep.subr.bf16.mxu0 0
    %955 = vmatpush1.bf16.xpose.msra.mxu0 0
    %956 = vmatprep.subr.bf16.mxu0 0
    %957 = vmatpush1.bf16.xpose.msra.mxu0 0
    %958 = vmatprep.subr.bf16.mxu0 0
    %959 = vmatpush1.bf16.xpose.msra.mxu0 0
    %960 = vmatprep.subr.bf16.mxu0 0
    %961 = vmatpush1.bf16.xpose.msra.mxu0 0
    %962 = vmatprep.subr.bf16.mxu0 0
    %963 = vmatpush1.bf16.xpose.msra.mxu0 0
    %964 = vmatprep.subr.bf16.mxu0 0
    %965 = vmatpush1.bf16.xpose.msra.mxu0 0
    %966 = vmatprep.subr.bf16.mxu0 0
    %967 = vmatpush1.bf16.xpose.msra.mxu0 0
    %968 = vmatprep.subr.bf16.mxu0 0
    %969 = vmatpush1.bf16.xpose.msra.mxu0 0
    %970 = vmatprep.mubr.bf16.mxu0 0
    %971 = vmatmul.mubr.bf16.gmra.mrb[0].mxu0 %v933
    %v972 = vpop.f32.mrb[0].mxu0
    %v973 = vadd.f32 %v36, %v972
    %v974 = vpop.f32.mrb[0].mxu0
    %v975 = vpop.f32.mrb[0].mxu0
    %v976 = vadd.f32 %v37, %v975
    %v977 = vpop.f32.mrb[0].mxu0
    %978 = vdwg.mxu0
    %v979 = vsel %vm147, %v973, -inf
    %980 = vmax.xlane.f32.xlu0 %v979
    %v981 = vpop.xlane.xlu0 %980
    %v982 = vsel %vm147, %v976, -inf
    %983 = vmax.xlane.f32.xlu0 %v982
    %v984 = vpop.xlane.xlu0 %983
    %v985 = vsub.f32 %v973, %v981
    %v986 = vsub.f32 %v976, %v984
    %v987 = vmul.f32 %v985, 1.442695
    %v988 = vpow.pop %v987
    %v989 = vmul.f32 %v986, 1.442695
    %v990 = vpow.pop %v989
    %v991 = vsel %vm147, %v988, 0.0
    %992 = vadd.xlane.f32.xlu0 %v991
    %v993 = vpop.xlane.xlu0 %992
    %v994 = vsel %vm147, %v990, 0.0
    %995 = vadd.xlane.f32.xlu0 %v994
    %v996 = vpop.xlane.xlu0 %995
    %v997 = vrcp.pop %v993
    %v998 = vrcp.pop %v996
    %v999 = vmul.f32 %v988, %v997
    %v1000 = vmul.f32 %v990, %v998
    %v1001 = vpack.c.bf16 %v1000, %v999
    %1002 = vrot.lane.b32.xlu0 %v806, 48
    %v1003 = vpop.permute.xlu0 %1002
    %v1006 = vsel %vm147, %v1001, 0
    %1008 = vmatprep.subr.bf16.mxu0 0
    %1009 = vmatpush1.bf16.msra.mxu0 %v1003
    %1010 = vmatprep.subr.bf16.mxu0 0
    %1011 = vmatpush1.bf16.msra.mxu0 0
    %1012 = vmatprep.subr.bf16.mxu0 0
    %1013 = vmatpush1.bf16.msra.mxu0 0
    %1014 = vmatprep.subr.bf16.mxu0 0
    %1015 = vmatpush1.bf16.msra.mxu0 0
    %1016 = vmatprep.subr.bf16.mxu0 0
    %1017 = vmatpush1.bf16.msra.mxu0 0
    %1018 = vmatprep.subr.bf16.mxu0 0
    %1019 = vmatpush1.bf16.msra.mxu0 0
    %1020 = vmatprep.subr.bf16.mxu0 0
    %1021 = vmatpush1.bf16.msra.mxu0 0
    %1022 = vmatprep.subr.bf16.mxu0 0
    %1023 = vmatpush1.bf16.msra.mxu0 0
    %1024 = vmatprep.subr.bf16.mxu0 0
    %1025 = vmatpush1.bf16.msra.mxu0 0
    %1026 = vmatprep.subr.bf16.mxu0 0
    %1027 = vmatpush1.bf16.msra.mxu0 0
    %1028 = vmatprep.subr.bf16.mxu0 0
    %1029 = vmatpush1.bf16.msra.mxu0 0
    %1030 = vmatprep.subr.bf16.mxu0 0
    %1031 = vmatpush1.bf16.msra.mxu0 0
    %1032 = vmatprep.subr.bf16.mxu0 0
    %1033 = vmatpush1.bf16.msra.mxu0 0
    %1034 = vmatprep.subr.bf16.mxu0 0
    %1035 = vmatpush1.bf16.msra.mxu0 0
    %1036 = vmatprep.subr.bf16.mxu0 0
    %1037 = vmatpush1.bf16.msra.mxu0 0
    %1038 = vmatprep.subr.bf16.mxu0 0
    %1039 = vmatpush1.bf16.msra.mxu0 0
    %1040 = vmatprep.mubr.bf16.mxu0 0
    %1041 = vmatmul.mubr.bf16.gmra.mrb[0].mxu0 %v1006
    %v1042 = vpop.f32.mrb[0].mxu0
    %v1043 = vadd.f32 0.0, %v1042
    %v1044 = vpop.f32.mrb[0].mxu0
    %v1045 = vpop.f32.mrb[0].mxu0
    %v1046 = vadd.f32 0.0, %v1045
    %v1047 = vpop.f32.mrb[0].mxu0
    %1048 = vdwg.mxu0
    %1051 = vrot.lane.b32.xlu0 %v1043, 16
    %v1052 = vpop.permute.xlu0 %1051
    %1053 = vrot.lane.b32.xlu0 %v1046, 16
    %v1054 = vpop.permute.xlu0 %1053
    %v1057 = vsel %vm147, %v922, %v1052
    %v1058 = vsel %vm147, %v925, %v1054
    %v1059 = vpack.c.bf16 %v1058, %v1057
    %s1060 = scalar_lea.vmem %s5, 16
    %v1061 = vld [vmem:[%s1060] sm:$0xf]
    %v1062 = vld [vmem:[%s1060 + $0x4] sm:$0xf]
    %v1063 = vld [vmem:[%s1060 + $0x8] sm:$0xf]
    %v1064 = vld [vmem:[%s1060 + $0xc] sm:$0xf]
    %v1069 = vunpack.c.l.b16 %v1061
    %v1070 = vunpack.c.l.b16 %v1062
    %v1071 = vunpack.c.l.b16 %v1063
    %v1072 = vunpack.c.l.b16 %v1064
    %v1073 = vpack.c.b16 %v1070, %v1069
    %v1074 = vpack.c.b16 %v1072, %v1071
    %v1078 = vsel %vm42, %v1059, 0
    %1080 = vmatprep.subr.bf16.mxu0 0
    %1081 = vmatpush1.bf16.msra.mxu0 %v1073
    %1082 = vmatprep.subr.bf16.mxu0 0
    %1083 = vmatpush1.bf16.msra.mxu0 %v1074
    %1084 = vmatprep.subr.bf16.mxu0 0
    %1085 = vmatpush1.bf16.msra.mxu0 0
    %1086 = vmatprep.subr.bf16.mxu0 0
    %1087 = vmatpush1.bf16.msra.mxu0 0
    %1088 = vmatprep.subr.bf16.mxu0 0
    %1089 = vmatpush1.bf16.msra.mxu0 0
    %1090 = vmatprep.subr.bf16.mxu0 0
    %1091 = vmatpush1.bf16.msra.mxu0 0
    %1092 = vmatprep.subr.bf16.mxu0 0
    %1093 = vmatpush1.bf16.msra.mxu0 0
    %1094 = vmatprep.subr.bf16.mxu0 0
    %1095 = vmatpush1.bf16.msra.mxu0 0
    %1096 = vmatprep.subr.bf16.mxu0 0
    %1097 = vmatpush1.bf16.msra.mxu0 0
    %1098 = vmatprep.subr.bf16.mxu0 0
    %1099 = vmatpush1.bf16.msra.mxu0 0
    %1100 = vmatprep.subr.bf16.mxu0 0
    %1101 = vmatpush1.bf16.msra.mxu0 0
    %1102 = vmatprep.subr.bf16.mxu0 0
    %1103 = vmatpush1.bf16.msra.mxu0 0
    %1104 = vmatprep.subr.bf16.mxu0 0
    %1105 = vmatpush1.bf16.msra.mxu0 0
    %1106 = vmatprep.subr.bf16.mxu0 0
    %1107 = vmatpush1.bf16.msra.mxu0 0
    %1108 = vmatprep.subr.bf16.mxu0 0
    %1109 = vmatpush1.bf16.msra.mxu0 0
    %1110 = vmatprep.subr.bf16.mxu0 0
    %1111 = vmatpush1.bf16.msra.mxu0 0
    %1112 = vmatprep.mubr.bf16.mxu0 0
    %1113 = vmatmul.mubr.bf16.gmra.mrb[0].mxu0 %v1078
    %v1114 = vpop.f32.mrb[0].mxu0
    %v1115 = vadd.f32 0.0, %v1114
    %v1116 = vpop.f32.mrb[0].mxu0
    %v1117 = vpop.f32.mrb[0].mxu0
    %v1118 = vadd.f32 0.0, %v1117
    %v1119 = vpop.f32.mrb[0].mxu0
    %1120 = vdwg.mxu0
    %v1121 = vadd.f32 %v681, %v1115
    %v1122 = vadd.f32 %v682, %v1118
    %v1123 = vmul.f32 %v1121, %v1121
    %v1124 = vmul.f32 %v1122, %v1122
    %v1125 = vsel %vm42, %v1123, 0.0
    %1126 = vadd.xlane.f32.xlu0 %v1125
    %v1127 = vpop.xlane.xlu0 %1126
    %v1128 = vsel %vm42, %v1124, 0.0
    %1129 = vadd.xlane.f32.xlu0 %v1128
    %v1130 = vpop.xlane.xlu0 %1129
    %v1131 = vmul.f32 %v1127, %v49
    %v1132 = vmul.f32 %v1130, %v49
    %v1133 = vadd.f32 %v1131, 1e-06
    %v1134 = vadd.f32 %v1132, 1e-06
    %v1135 = vrsqrt.pop %v1133
    %v1136 = vrsqrt.pop %v1134
    %v1137 = vmul.f32 %v1121, %v1135
    %v1138 = vmul.f32 %v1122, %v1136
    %s1139 = scalar_lea.vmem %s6, 1
    %v1140 = vld [vmem:[%s1139] sm:$0x1]
    %v1142 = vlaneseq
    %v1143 = vshrl.u32 %v1142, 7
    %v1144 = vsub.s32 0, %v1143
    %v1145 = vrot.slane %v1140, %v1144
    %v1147 = vmul.f32 %v1137, %v1145
    %v1148 = vmul.f32 %v1138, %v1145
    %v1149 = vpack.c.bf16 %v1148, %v1147
    %s1150 = scalar_lea.vmem %s7, 16
    %v1151 = vld [vmem:[%s1150] sm:$0xf]
    %v1152 = vld [vmem:[%s1150 + $0x4] sm:$0xf]
    %v1153 = vld [vmem:[%s1150 + $0x8] sm:$0xf]
    %v1154 = vld [vmem:[%s1150 + $0xc] sm:$0xf]
    %v1159 = vunpack.c.l.b16 %v1151
    %v1160 = vunpack.c.l.b16 %v1152
    %v1161 = vunpack.c.l.b16 %v1153
    %v1162 = vunpack.c.l.b16 %v1154
    %v1163 = vpack.c.b16 %v1160, %v1159
    %v1164 = vpack.c.b16 %v1162, %v1161
    %v1168 = vsel %vm42, %v1149, 0
    %1170 = vmatprep.subr.bf16.mxu0 0
    %1171 = vmatpush1.bf16.msra.mxu0 %v1163
    %1172 = vmatprep.subr.bf16.mxu0 0
    %1173 = vmatpush1.bf16.msra.mxu0 %v1164
    %1174 = vmatprep.subr.bf16.mxu0 0
    %1175 = vmatpush1.bf16.msra.mxu0 0
    %1176 = vmatprep.subr.bf16.mxu0 0
    %1177 = vmatpush1.bf16.msra.mxu0 0
    %1178 = vmatprep.subr.bf16.mxu0 0
    %1179 = vmatpush1.bf16.msra.mxu0 0
    %1180 = vmatprep.subr.bf16.mxu0 0
    %1181 = vmatpush1.bf16.msra.mxu0 0
    %1182 = vmatprep.subr.bf16.mxu0 0
    %1183 = vmatpush1.bf16.msra.mxu0 0
    %1184 = vmatprep.subr.bf16.mxu0 0
    %1185 = vmatpush1.bf16.msra.mxu0 0
    %1186 = vmatprep.subr.bf16.mxu0 0
    %1187 = vmatpush1.bf16.msra.mxu0 0
    %1188 = vmatprep.subr.bf16.mxu0 0
    %1189 = vmatpush1.bf16.msra.mxu0 0
    %1190 = vmatprep.subr.bf16.mxu0 0
    %1191 = vmatpush1.bf16.msra.mxu0 0
    %1192 = vmatprep.subr.bf16.mxu0 0
    %1193 = vmatpush1.bf16.msra.mxu0 0
    %1194 = vmatprep.subr.bf16.mxu0 0
    %1195 = vmatpush1.bf16.msra.mxu0 0
    %1196 = vmatprep.subr.bf16.mxu0 0
    %1197 = vmatpush1.bf16.msra.mxu0 0
    %1198 = vmatprep.subr.bf16.mxu0 0
    %1199 = vmatpush1.bf16.msra.mxu0 0
    %1200 = vmatprep.subr.bf16.mxu0 0
    %1201 = vmatpush1.bf16.msra.mxu0 0
    %1202 = vmatprep.mubr.bf16.mxu0 0
    %1203 = vmatmul.mubr.bf16.gmra.mrb[0].mxu0 %v1168
    %v1204 = vpop.f32.mrb[0].mxu0
    %v1205 = vadd.f32 0.0, %v1204
    %v1206 = vpop.f32.mrb[0].mxu0
    %v1207 = vpop.f32.mrb[0].mxu0
    %v1208 = vadd.f32 0.0, %v1207
    %v1209 = vpop.f32.mrb[0].mxu0
    %1210 = vdwg.mxu0
    %v1211 = vxor.u32 %v1205, 2147483648
    %v1212 = vxor.u32 %v1208, 2147483648
    %v1213 = vmul.f32 %v1211, 1.442695
    %v1214 = vpow.pop %v1213
    %v1215 = vmul.f32 %v1212, 1.442695
    %v1216 = vpow.pop %v1215
    %v1217 = vadd.f32 %v1214, 1.0
    %v1218 = vadd.f32 %v1216, 1.0
    %v1219 = vrcp.pop %v1217
    %v1220 = vmul.f32 1.0, %v1219
    %v1221 = vrcp.pop %v1218
    %v1222 = vmul.f32 1.0, %v1221
    %v1223 = vmul.f32 %v1205, %v1220
    %v1224 = vmul.f32 %v1208, %v1222
    %1227 = vrot.lane.b32.xlu0 %v1205, 64
    %v1228 = vpop.permute.xlu0 %1227
    %1229 = vrot.lane.b32.xlu0 %v1208, 64
    %v1230 = vpop.permute.xlu0 %1229
    %v1233 = vmul.f32 %v1223, %v1228
    %v1234 = vmul.f32 %v1224, %v1230
    %v1235 = vpack.c.bf16 %v1234, %v1233
    %s1236 = scalar_lea.vmem %s8, 32
    %v1237 = vld [vmem:[%s1236] sm:$0xf]
    %v1238 = vld [vmem:[%s1236 + $0x4] sm:$0xf]
    %v1239 = vld [vmem:[%s1236 + $0x8] sm:$0xf]
    %v1240 = vld [vmem:[%s1236 + $0xc] sm:$0xf]
    %v1241 = vld [vmem:[%s1236 + $0x10] sm:$0xf]
    %v1242 = vld [vmem:[%s1236 + $0x14] sm:$0xf]
    %v1243 = vld [vmem:[%s1236 + $0x18] sm:$0xf]
    %v1244 = vld [vmem:[%s1236 + $0x1c] sm:$0xf]
    %v1253 = vunpack.c.l.b16 %v1237
    %v1254 = vunpack.c.l.b16 %v1238
    %v1255 = vunpack.c.l.b16 %v1239
    %v1256 = vunpack.c.l.b16 %v1240
    %v1257 = vunpack.c.l.b16 %v1241
    %v1258 = vunpack.c.l.b16 %v1242
    %v1259 = vunpack.c.l.b16 %v1243
    %v1260 = vunpack.c.l.b16 %v1244
    %v1261 = vpack.c.b16 %v1254, %v1253
    %v1262 = vpack.c.b16 %v1256, %v1255
    %v1263 = vpack.c.b16 %v1258, %v1257
    %v1264 = vpack.c.b16 %v1260, %v1259
    %v1270 = vsel %vm636, %v1235, 0
    %1272 = vmatprep.subr.bf16.mxu0 0
    %1273 = vmatpush1.bf16.msra.mxu0 %v1261
    %1274 = vmatprep.subr.bf16.mxu0 0
    %1275 = vmatpush1.bf16.msra.mxu0 %v1262
    %1276 = vmatprep.subr.bf16.mxu0 0
    %1277 = vmatpush1.bf16.msra.mxu0 %v1263
    %1278 = vmatprep.subr.bf16.mxu0 0
    %1279 = vmatpush1.bf16.msra.mxu0 %v1264
    %1280 = vmatprep.subr.bf16.mxu0 0
    %1281 = vmatpush1.bf16.msra.mxu0 0
    %1282 = vmatprep.subr.bf16.mxu0 0
    %1283 = vmatpush1.bf16.msra.mxu0 0
    %1284 = vmatprep.subr.bf16.mxu0 0
    %1285 = vmatpush1.bf16.msra.mxu0 0
    %1286 = vmatprep.subr.bf16.mxu0 0
    %1287 = vmatpush1.bf16.msra.mxu0 0
    %1288 = vmatprep.subr.bf16.mxu0 0
    %1289 = vmatpush1.bf16.msra.mxu0 0
    %1290 = vmatprep.subr.bf16.mxu0 0
    %1291 = vmatpush1.bf16.msra.mxu0 0
    %1292 = vmatprep.subr.bf16.mxu0 0
    %1293 = vmatpush1.bf16.msra.mxu0 0
    %1294 = vmatprep.subr.bf16.mxu0 0
    %1295 = vmatpush1.bf16.msra.mxu0 0
    %1296 = vmatprep.subr.bf16.mxu0 0
    %1297 = vmatpush1.bf16.msra.mxu0 0
    %1298 = vmatprep.subr.bf16.mxu0 0
    %1299 = vmatpush1.bf16.msra.mxu0 0
    %1300 = vmatprep.subr.bf16.mxu0 0
    %1301 = vmatpush1.bf16.msra.mxu0 0
    %1302 = vmatprep.subr.bf16.mxu0 0
    %1303 = vmatpush1.bf16.msra.mxu0 0
    %1304 = vmatprep.mubr.bf16.mxu0 0
    %1305 = vmatmul.mubr.bf16.gmra.mrb[0].mxu0 %v1270
    %v1306 = vpop.f32.mrb[0].mxu0
    %v1307 = vadd.f32 0.0, %v1306
    %v1308 = vpop.f32.mrb[0].mxu0
    %v1309 = vpop.f32.mrb[0].mxu0
    %v1310 = vadd.f32 0.0, %v1309
    %v1311 = vpop.f32.mrb[0].mxu0
    %1312 = vdwg.mxu0
    %v1313 = vadd.f32 %v1121, %v1307
    %v1314 = vadd.f32 %v1122, %v1310
    %1315 = vst.msk [vmem:[#allocation2] sm:$0xff] %vm42, %v1313
    %1316 = vst.msk [vmem:[#allocation2 + $0x8] sm:$0xff] %vm42, %v1314
    // Predicated region
    $region38: #{llama_first_half.1} parent=1 // pred_check
      _
    $region39: #{llama_first_half.1} parent=1 // pred_check_branch
      %1318 = sbr.rel (0) target = $region41
    $region40: #{llama_first_half.1} parent=1 // pred_region
      %s1320 = ssub.s32 256, 256
      %1321 = vsyncadd [#allocation3], %s1320
      %s1322 = sshll.u32 [#allocation2], 4
      %s1323 = int_to_ptr.vmem [resolvable:$true] %s1322
      %1328 = dma.vmem_to_hbm [thread:$0]  %s1323, 256, %s9, [#allocation3], 128, 128, 8
    $region41: #{llama_first_half.1} parent=1 // pred_fallthru
      _
    // Predicated region
    $region42: #{llama_first_half.1} parent=1 // pred_check
      _
    $region43: #{llama_first_half.1} parent=1 // pred_check_branch
      %1330 = sbr.rel (0) target = $region45
    $region44: #{llama_first_half.1} parent=1 // pred_region
      %1331 = dma.done [#allocation3], 256
    $region45: #{llama_first_half.1} parent=1 // pred_fallthru
      _
    %1332 = vsyncpa [#allocation3], 1

</llo_original>
